<compile_context>
chip_gen: v7x
topology: tpu7x:2x2x1
jax: 0.10.0
libtpu: 0.0.40
codegen_flags: <defaults>
</compile_context>

<pallas_src>
import functools
import math

import jax
import jax.numpy as jnp
from jax.experimental import pallas as pl
from jax.experimental.pallas import tpu as pltpu


# -----------------------------------------------------------------------------
# Helpers
# -----------------------------------------------------------------------------
def _pick_tile(m, target=256):
    """Largest divisor of m that is <= target (full block for small m)."""
    if m <= target:
        return m
    best = 1
    for t in range(1, target + 1):
        if m % t == 0:
            best = t
    return best


# -----------------------------------------------------------------------------
# Kernels
# -----------------------------------------------------------------------------
def _qkv_proj_kernel(x_ref, w_ref, b_ref, o_ref):
    # x: (tm, E) f32, w: (E, 3E) bf16, b: (1, 3E) f32 -> o: (tm, 3E) f32
    x = x_ref[...].astype(jnp.bfloat16)
    o_ref[...] = (
        jnp.dot(x, w_ref[...], preferred_element_type=jnp.float32) + b_ref[...]
    )


def _mha_kernel(qkv_ref, o_ref, *, num_heads, head_dim, scale):
    # qkv block: (1, L, 3E) per batch element; output block: (1, L, E) lane-dense.
    s = qkv_ref[0]                                   # (L, 3E) f32
    E = num_heads * head_dim
    outs = []
    for h in range(num_heads):                       # static head loop
        lo = h * head_dim
        hi = lo + head_dim
        q = (s[:, lo:hi] * scale).astype(jnp.bfloat16)        # pre-scale q (L x Dh)
        k = s[:, E + lo:E + hi].astype(jnp.bfloat16)
        v = s[:, 2 * E + lo:2 * E + hi].astype(jnp.bfloat16)
        # QK^T without materializing a transposed copy: contract last axes.
        logits = jax.lax.dot_general(
            q, k,
            dimension_numbers=(((1,), (1,)), ((), ())),
            preferred_element_type=jnp.float32,
        )                                                      # (L, L) f32
        m = jnp.max(logits, axis=-1, keepdims=True)
        p = jnp.exp(logits - m)
        p = p * pl.reciprocal(jnp.sum(p, axis=-1, keepdims=True), approx=True)
        outs.append(
            jnp.dot(p.astype(jnp.bfloat16), v, preferred_element_type=jnp.float32)
        )                                                      # (L, Dh) f32
    # Single lane-dense (L, E) store.
    o_ref[0] = jnp.concatenate(outs, axis=-1)


def _outproj_add_ln_kernel(a_ref, r_ref, w_ref, b_ref, g_ref, be_ref, o_ref, *, eps):
    # y = LayerNorm(residual + attn @ W_out + b_out)   [dropout = identity, eval mode]
    a = a_ref[...].astype(jnp.bfloat16)
    proj = jnp.dot(a, w_ref[...], preferred_element_type=jnp.float32) + b_ref[...]
    y = r_ref[...] + proj
    mu = jnp.mean(y, axis=-1, keepdims=True)
    d = y - mu
    var = jnp.mean(d * d, axis=-1, keepdims=True)
    o_ref[...] = d * jax.lax.rsqrt(var + eps) * g_ref[...] + be_ref[...]


def _ffn_add_ln_kernel(x_ref, w1_ref, b1_ref, w2_ref, b2_ref, g_ref, be_ref, o_ref,
                       *, eps):
    # y = LayerNorm(x + relu(x @ W1 + b1) @ W2 + b2)
    x = x_ref[...]                                    # (tm, E) f32
    h = jnp.dot(x.astype(jnp.bfloat16), w1_ref[...],
                preferred_element_type=jnp.float32) + b1_ref[...]
    h = jnp.maximum(h, 0.0)
    f = jnp.dot(h.astype(jnp.bfloat16), w2_ref[...],
                preferred_element_type=jnp.float32) + b2_ref[...]
    y = x + f
    mu = jnp.mean(y, axis=-1, keepdims=True)
    d = y - mu
    var = jnp.mean(d * d, axis=-1, keepdims=True)
    o_ref[...] = d * jax.lax.rsqrt(var + eps) * g_ref[...] + be_ref[...]


# -----------------------------------------------------------------------------
# Pallas wrappers (M-tiled grids, weights resident, parallel semantics)
# -----------------------------------------------------------------------------
def qkv_projection(x, w_t_bf16, b, tm):
    M, E = x.shape
    N3 = w_t_bf16.shape[1]
    return pl.pallas_call(
        _qkv_proj_kernel,
        out_shape=jax.ShapeDtypeStruct((M, N3), jnp.float32),
        grid=(M // tm,),
        in_specs=[
            pl.BlockSpec((tm, E), lambda i: (i, 0)),
            pl.BlockSpec((E, N3), lambda i: (0, 0)),
            pl.BlockSpec((1, N3), lambda i: (0, 0)),
        ],
        out_specs=pl.BlockSpec((tm, N3), lambda i: (i, 0)),
        compiler_params=pltpu.CompilerParams(dimension_semantics=("parallel",)),
    )(x, w_t_bf16, b)


def mha(qkv_nle, num_heads, head_dim, scale):
    N, L, threeE = qkv_nle.shape
    E = num_heads * head_dim
    return pl.pallas_call(
        functools.partial(_mha_kernel, num_heads=num_heads,
                          head_dim=head_dim, scale=scale),
        out_shape=jax.ShapeDtypeStruct((N, L, E), jnp.float32),
        grid=(N,),
        in_specs=[pl.BlockSpec((1, L, threeE), lambda n: (n, 0, 0))],
        out_specs=pl.BlockSpec((1, L, E), lambda n: (n, 0, 0)),
        compiler_params=pltpu.CompilerParams(dimension_semantics=("parallel",)),
    )(qkv_nle)


def outproj_add_ln(attn, resid, w_t_bf16, b, gamma, beta, tm, eps=1e-5):
    M, E = attn.shape
    return pl.pallas_call(
        functools.partial(_outproj_add_ln_kernel, eps=eps),
        out_shape=jax.ShapeDtypeStruct((M, E), jnp.float32),
        grid=(M // tm,),
        in_specs=[
            pl.BlockSpec((tm, E), lambda i: (i, 0)),   # attn output
            pl.BlockSpec((tm, E), lambda i: (i, 0)),   # residual
            pl.BlockSpec((E, E), lambda i: (0, 0)),    # W_out^T
            pl.BlockSpec((1, E), lambda i: (0, 0)),    # b_out
            pl.BlockSpec((1, E), lambda i: (0, 0)),    # gamma1
            pl.BlockSpec((1, E), lambda i: (0, 0)),    # beta1
        ],
        out_specs=pl.BlockSpec((tm, E), lambda i: (i, 0)),
        compiler_params=pltpu.CompilerParams(dimension_semantics=("parallel",)),
    )(attn, resid, w_t_bf16, b, gamma, beta)


def ffn_add_ln(x, w1_t_bf16, b1, w2_t_bf16, b2, gamma, beta, tm, eps=1e-5):
    M, E = x.shape
    F = w1_t_bf16.shape[1]
    return pl.pallas_call(
        functools.partial(_ffn_add_ln_kernel, eps=eps),
        out_shape=jax.ShapeDtypeStruct((M, E), jnp.float32),
        grid=(M // tm,),
        in_specs=[
            pl.BlockSpec((tm, E), lambda i: (i, 0)),   # x (also the residual)
            pl.BlockSpec((E, F), lambda i: (0, 0)),    # W1^T
            pl.BlockSpec((1, F), lambda i: (0, 0)),    # b1
            pl.BlockSpec((F, E), lambda i: (0, 0)),    # W2^T
            pl.BlockSpec((1, E), lambda i: (0, 0)),    # b2
            pl.BlockSpec((1, E), lambda i: (0, 0)),    # gamma2
            pl.BlockSpec((1, E), lambda i: (0, 0)),    # beta2
        ],
        out_specs=pl.BlockSpec((tm, E), lambda i: (i, 0)),
        compiler_params=pltpu.CompilerParams(dimension_semantics=("parallel",)),
    )(x, w1_t_bf16, b1, w2_t_bf16, b2, gamma, beta)


# -----------------------------------------------------------------------------
# Module forward
# -----------------------------------------------------------------------------
def self_attention_module_forward(x, params, num_heads):
    """x: (L, N, E) float32 (seq-first, PyTorch MHA default). Returns (L, N, E)."""
    L, N, E = x.shape
    H = num_heads
    Dh = E // H
    scale = 1.0 / math.sqrt(Dh)
    M = N * L

    # Single layout change to batch-major; everything downstream is (N*L, E)
    # token-major so attention blocks are lane-dense and no head transposes occur.
    xt = jnp.transpose(x, (1, 0, 2)).reshape(M, E)

    tm = _pick_tile(M)

    # bf16 MXU operands (weights); f32 accumulation is requested in every dot.
    w_in = params["in_proj_w_t"].astype(jnp.bfloat16)
    w_out = params["out_proj_w_t"].astype(jnp.bfloat16)
    w1 = params["ffn_w1_t"].astype(jnp.bfloat16)
    w2 = params["ffn_w2_t"].astype(jnp.bfloat16)

    # --- Multi-head self-attention ------------------------------------------
    qkv = qkv_projection(xt, w_in, params["in_proj_b"], tm)          # (M, 3E)
    attn = mha(qkv.reshape(N, L, 3 * E), H, Dh, scale).reshape(M, E)

    # out_proj + residual (+dropout identity) + LayerNorm1, fused
    y1 = outproj_add_ln(attn, xt, w_out, params["out_proj_b"],
                        params["ln1_g"], params["ln1_b"], tm)

    # FFN + residual (+dropout identity) + LayerNorm2, fused
    y2 = ffn_add_ln(y1, w1, params["ffn_b1"], w2, params["ffn_b2"],
                    params["ln2_g"], params["ln2_b"], tm)

    return jnp.transpose(y2.reshape(N, L, E), (1, 0, 2))


# -----------------------------------------------------------------------------
# Deterministic parameter init (matches shapes in __init__)
# -----------------------------------------------------------------------------
def init_params(key, embed_dim, ff_hidden_dim):
    E, F = embed_dim, ff_hidden_dim
    ks = jax.random.split(key, 6)
    s = 0.05
    return {
        # nn.MultiheadAttention: in_proj_weight (3E, E) -> stored transposed (E, 3E)
        "in_proj_w_t": (jax.random.normal(ks[0], (3 * E, E), jnp.float32) * s).T,
        "in_proj_b": jnp.zeros((1, 3 * E), jnp.float32),
        # out_proj: Linear(E, E)
        "out_proj_w_t": (jax.random.normal(ks[1], (E, E), jnp.float32) * s).T,
        "out_proj_b": jnp.zeros((1, E), jnp.float32),
        # LayerNorm(E) x2 (PyTorch default affine init)
        "ln1_g": jnp.ones((1, E), jnp.float32),
        "ln1_b": jnp.zeros((1, E), jnp.float32),
        "ln2_g": jnp.ones((1, E), jnp.float32),
        "ln2_b": jnp.zeros((1, E), jnp.float32),
        # FFN: Linear(E, F), Linear(F, E)
        "ffn_w1_t": (jax.random.normal(ks[2], (F, E), jnp.float32) * s).T,
        "ffn_b1": (jax.random.normal(ks[3], (1, F), jnp.float32) * s),
        "ffn_w2_t": (jax.random.normal(ks[4], (E, F), jnp.float32) * s).T,
        "ffn_b2": (jax.random.normal(ks[5], (1, E), jnp.float32) * s),
    }


if __name__ == "__main__":
    # Small shapes consistent with the module's forward: x is (seq, batch, embed)
    L, N, E, H, F = 8, 2, 32, 4, 64

    key = jax.random.PRNGKey(0)
    k_x, k_p = jax.random.split(key)
    x = jax.random.normal(k_x, (L, N, E), jnp.float32)
    params = init_params(k_p, E, F)

    fwd = jax.jit(functools.partial(self_attention_module_forward, num_heads=H))
    out = fwd(x, params)
    out = jax.block_until_ready(out)

    assert out.shape == (L, N, E)
    assert jnp.all(jnp.isfinite(out))
    print("KERNEL_OK")
</pallas_src>

<mosaic_0001>
module attributes {stable_mosaic.version = 11 : i64} {
  func.func @_qkv_proj_kernel(%arg0: i32, %arg1: memref<16x32xf32, #tpu.memory_space<vmem>>, %arg2: memref<32x96xbf16, #tpu.memory_space<vmem>>, %arg3: memref<1x96xf32, #tpu.memory_space<vmem>>, %arg4: memref<16x96xf32, #tpu.memory_space<vmem>>) attributes {dimension_semantics = [#tpu.dimension_semantics<parallel>], iteration_bounds = array<i64: 1>, scalar_prefetch = 0 : i64, scratch_operands = 0 : i64, tpu.core_type = #tpu.core_type<tc>, window_params = [{transform_indices = @transform_0, window_bounds = array<i64: 16, 32>}, {pipeline_mode = #tpu.pipeline_mode<synchronous>, transform_indices = @transform_1, window_bounds = array<i64: 32, 96>}, {pipeline_mode = #tpu.pipeline_mode<synchronous>, transform_indices = @transform_2, window_bounds = array<i64: 1, 96>}, {transform_indices = @transform_3, window_bounds = array<i64: 16, 96>}]} {
    %c0 = arith.constant 0 : index
    %c0_0 = arith.constant 0 : index
    %0 = vector.load %arg1[%c0, %c0_0] : memref<16x32xf32, #tpu.memory_space<vmem>>, vector<16x32xf32>
    %1 = arith.truncf %0 : vector<16x32xf32> to vector<16x32xbf16>
    %c0_1 = arith.constant 0 : index
    %c0_2 = arith.constant 0 : index
    %2 = vector.load %arg2[%c0_1, %c0_2] : memref<32x96xbf16, #tpu.memory_space<vmem>>, vector<32x96xbf16>
    %cst = arith.constant dense<0.000000e+00> : vector<16x96xf32>
    %3 = tpu.matmul %1, %2, %cst {dimension_numbers = #tpu.dot_dimension_numbers<[1], [0], [0], [1], [0, 0, 1, 1], [], []>} : vector<16x32xbf16>, vector<32x96xbf16>, vector<16x96xf32> -> vector<16x96xf32>
    %c0_3 = arith.constant 0 : index
    %c0_4 = arith.constant 0 : index
    %4 = vector.load %arg3[%c0_3, %c0_4] : memref<1x96xf32, #tpu.memory_space<vmem>>, vector<1x96xf32>
    %5 = vector.broadcast %4 : vector<1x96xf32> to vector<16x96xf32>
    %6 = arith.addf %3, %5 : vector<16x96xf32>
    %c0_5 = arith.constant 0 : index
    %c0_6 = arith.constant 0 : index
    %7 = vector.load %arg4[%c0_5, %c0_6] : memref<16x96xf32, #tpu.memory_space<vmem>>, vector<16x96xf32>
    tpu.vector_store %arg4[%c0_5, %c0_6], %6 {strides = array<i32>} : memref<16x96xf32, #tpu.memory_space<vmem>>, vector<16x96xf32>,
    return
  }
  func.func @transform_0(%arg0: i32) -> (i32, i32) {
    %c0_i32 = arith.constant 0 : i32
    %c0_i32_0 = arith.constant 0 : i32
    return %arg0, %c0_i32 : i32, i32
  }
  func.func @transform_1(%arg0: i32) -> (i32, i32) {
    %c0_i32 = arith.constant 0 : i32
    %c0_i32_0 = arith.constant 0 : i32
    %c0_i32_1 = arith.constant 0 : i32
    return %c0_i32, %c0_i32_0 : i32, i32
  }
  func.func @transform_2(%arg0: i32) -> (i32, i32) {
    %c0_i32 = arith.constant 0 : i32
    %c0_i32_0 = arith.constant 0 : i32
    %c0_i32_1 = arith.constant 0 : i32
    return %c0_i32, %c0_i32_0 : i32, i32
  }
  func.func @transform_3(%arg0: i32) -> (i32, i32) {
    %c0_i32 = arith.constant 0 : i32
    %c0_i32_0 = arith.constant 0 : i32
    return %arg0, %c0_i32 : i32, i32
  }
}

module attributes {stable_mosaic.version = 11 : i64} {
  func.func @_mha_kernel(%arg0: i32, %arg1: memref<1x8x96xf32, #tpu.memory_space<vmem>>, %arg2: memref<1x8x32xf32, #tpu.memory_space<vmem>>) attributes {dimension_semantics = [#tpu.dimension_semantics<parallel>], iteration_bounds = array<i64: 2>, scalar_prefetch = 0 : i64, scratch_operands = 0 : i64, tpu.core_type = #tpu.core_type<tc>, window_params = [{transform_indices = @transform_0, window_bounds = array<i64: 1, 8, 96>}, {transform_indices = @transform_1, window_bounds = array<i64: 1, 8, 32>}]} {
    %c0 = arith.constant 0 : index
    %c0_0 = arith.constant 0 : index
    %c0_1 = arith.constant 0 : index
    %0 = vector.load %arg1[%c0, %c0_0, %c0_1] : memref<1x8x96xf32, #tpu.memory_space<vmem>>, vector<1x8x96xf32>
    %1 = vector.shape_cast %0 : vector<1x8x96xf32> to vector<8x96xf32>
    %2 = vector.extract_strided_slice %1 {offsets = [0, 0], sizes = [8, 8], strides = [1, 1]} : vector<8x96xf32> to vector<8x8xf32>
    %cst = arith.constant 0.353553385 : f32
    %3 = vector.broadcast %cst : f32 to vector<8x8xf32>
    %4 = arith.mulf %2, %3 : vector<8x8xf32>
    %5 = arith.truncf %4 : vector<8x8xf32> to vector<8x8xbf16>
    %6 = vector.extract_strided_slice %1 {offsets = [0, 32], sizes = [8, 8], strides = [1, 1]} : vector<8x96xf32> to vector<8x8xf32>
    %7 = arith.truncf %6 : vector<8x8xf32> to vector<8x8xbf16>
    %8 = vector.extract_strided_slice %1 {offsets = [0, 64], sizes = [8, 8], strides = [1, 1]} : vector<8x96xf32> to vector<8x8xf32>
    %9 = arith.truncf %8 : vector<8x8xf32> to vector<8x8xbf16>
    %cst_2 = arith.constant dense<0.000000e+00> : vector<8x8xf32>
    %10 = tpu.matmul %5, %7, %cst_2 {dimension_numbers = #tpu.dot_dimension_numbers<[1], [1], [0], [0], [0, 0, 1, 0], [], []>} : vector<8x8xbf16>, vector<8x8xbf16>, vector<8x8xf32> -> vector<8x8xf32>
    %cst_3 = arith.constant dense<0xFF800000> : vector<8xf32>
    %11 = vector.multi_reduction <maximumf>, %10, %cst_3 [1] : vector<8x8xf32> to vector<8xf32>
    %12 = vector.shape_cast %11 : vector<8xf32> to vector<8x1xf32>
    %13 = vector.broadcast %12 : vector<8x1xf32> to vector<8x8xf32>
    %14 = arith.subf %10, %13 : vector<8x8xf32>
    %15 = math.exp %14 : vector<8x8xf32>
    %cst_4 = arith.constant dense<0.000000e+00> : vector<8xf32>
    %16 = vector.multi_reduction <add>, %15, %cst_4 [1] : vector<8x8xf32> to vector<8xf32>
    %17 = vector.shape_cast %16 : vector<8xf32> to vector<8x1xf32>
    %18 = tpu.reciprocal %17 {approx = true} : vector<8x1xf32> -> vector<8x1xf32>
    %19 = vector.broadcast %18 : vector<8x1xf32> to vector<8x8xf32>
    %20 = arith.mulf %15, %19 : vector<8x8xf32>
    %21 = arith.truncf %20 : vector<8x8xf32> to vector<8x8xbf16>
    %cst_5 = arith.constant dense<0.000000e+00> : vector<8x8xf32>
    %22 = tpu.matmul %21, %9, %cst_5 {dimension_numbers = #tpu.dot_dimension_numbers<[1], [0], [0], [1], [0, 0, 1, 1], [], []>} : vector<8x8xbf16>, vector<8x8xbf16>, vector<8x8xf32> -> vector<8x8xf32>
    %23 = vector.extract_strided_slice %1 {offsets = [0, 8], sizes = [8, 8], strides = [1, 1]} : vector<8x96xf32> to vector<8x8xf32>
    %cst_6 = arith.constant 0.353553385 : f32
    %24 = vector.broadcast %cst_6 : f32 to vector<8x8xf32>
    %25 = arith.mulf %23, %24 : vector<8x8xf32>
    %26 = arith.truncf %25 : vector<8x8xf32> to vector<8x8xbf16>
    %27 = vector.extract_strided_slice %1 {offsets = [0, 40], sizes = [8, 8], strides = [1, 1]} : vector<8x96xf32> to vector<8x8xf32>
    %28 = arith.truncf %27 : vector<8x8xf32> to vector<8x8xbf16>
    %29 = vector.extract_strided_slice %1 {offsets = [0, 72], sizes = [8, 8], strides = [1, 1]} : vector<8x96xf32> to vector<8x8xf32>
    %30 = arith.truncf %29 : vector<8x8xf32> to vector<8x8xbf16>
    %cst_7 = arith.constant dense<0.000000e+00> : vector<8x8xf32>
    %31 = tpu.matmul %26, %28, %cst_7 {dimension_numbers = #tpu.dot_dimension_numbers<[1], [1], [0], [0], [0, 0, 1, 0], [], []>} : vector<8x8xbf16>, vector<8x8xbf16>, vector<8x8xf32> -> vector<8x8xf32>
    %cst_8 = arith.constant dense<0xFF800000> : vector<8xf32>
    %32 = vector.multi_reduction <maximumf>, %31, %cst_8 [1] : vector<8x8xf32> to vector<8xf32>
    %33 = vector.shape_cast %32 : vector<8xf32> to vector<8x1xf32>
    %34 = vector.broadcast %33 : vector<8x1xf32> to vector<8x8xf32>
    %35 = arith.subf %31, %34 : vector<8x8xf32>
    %36 = math.exp %35 : vector<8x8xf32>
    %cst_9 = arith.constant dense<0.000000e+00> : vector<8xf32>
    %37 = vector.multi_reduction <add>, %36, %cst_9 [1] : vector<8x8xf32> to vector<8xf32>
    %38 = vector.shape_cast %37 : vector<8xf32> to vector<8x1xf32>
    %39 = tpu.reciprocal %38 {approx = true} : vector<8x1xf32> -> vector<8x1xf32>
    %40 = vector.broadcast %39 : vector<8x1xf32> to vector<8x8xf32>
    %41 = arith.mulf %36, %40 : vector<8x8xf32>
    %42 = arith.truncf %41 : vector<8x8xf32> to vector<8x8xbf16>
    %cst_10 = arith.constant dense<0.000000e+00> : vector<8x8xf32>
    %43 = tpu.matmul %42, %30, %cst_10 {dimension_numbers = #tpu.dot_dimension_numbers<[1], [0], [0], [1], [0, 0, 1, 1], [], []>} : vector<8x8xbf16>, vector<8x8xbf16>, vector<8x8xf32> -> vector<8x8xf32>
    %44 = vector.extract_strided_slice %1 {offsets = [0, 16], sizes = [8, 8], strides = [1, 1]} : vector<8x96xf32> to vector<8x8xf32>
    %cst_11 = arith.constant 0.353553385 : f32
    %45 = vector.broadcast %cst_11 : f32 to vector<8x8xf32>
    %46 = arith.mulf %44, %45 : vector<8x8xf32>
    %47 = arith.truncf %46 : vector<8x8xf32> to vector<8x8xbf16>
    %48 = vector.extract_strided_slice %1 {offsets = [0, 48], sizes = [8, 8], strides = [1, 1]} : vector<8x96xf32> to vector<8x8xf32>
    %49 = arith.truncf %48 : vector<8x8xf32> to vector<8x8xbf16>
    %50 = vector.extract_strided_slice %1 {offsets = [0, 80], sizes = [8, 8], strides = [1, 1]} : vector<8x96xf32> to vector<8x8xf32>
    %51 = arith.truncf %50 : vector<8x8xf32> to vector<8x8xbf16>
    %cst_12 = arith.constant dense<0.000000e+00> : vector<8x8xf32>
    %52 = tpu.matmul %47, %49, %cst_12 {dimension_numbers = #tpu.dot_dimension_numbers<[1], [1], [0], [0], [0, 0, 1, 0], [], []>} : vector<8x8xbf16>, vector<8x8xbf16>, vector<8x8xf32> -> vector<8x8xf32>
    %cst_13 = arith.constant dense<0xFF800000> : vector<8xf32>
    %53 = vector.multi_reduction <maximumf>, %52, %cst_13 [1] : vector<8x8xf32> to vector<8xf32>
    %54 = vector.shape_cast %53 : vector<8xf32> to vector<8x1xf32>
    %55 = vector.broadcast %54 : vector<8x1xf32> to vector<8x8xf32>
    %56 = arith.subf %52, %55 : vector<8x8xf32>
    %57 = math.exp %56 : vector<8x8xf32>
    %cst_14 = arith.constant dense<0.000000e+00> : vector<8xf32>
    %58 = vector.multi_reduction <add>, %57, %cst_14 [1] : vector<8x8xf32> to vector<8xf32>
    %59 = vector.shape_cast %58 : vector<8xf32> to vector<8x1xf32>
    %60 = tpu.reciprocal %59 {approx = true} : vector<8x1xf32> -> vector<8x1xf32>
    %61 = vector.broadcast %60 : vector<8x1xf32> to vector<8x8xf32>
    %62 = arith.mulf %57, %61 : vector<8x8xf32>
    %63 = arith.truncf %62 : vector<8x8xf32> to vector<8x8xbf16>
    %cst_15 = arith.constant dense<0.000000e+00> : vector<8x8xf32>
    %64 = tpu.matmul %63, %51, %cst_15 {dimension_numbers = #tpu.dot_dimension_numbers<[1], [0], [0], [1], [0, 0, 1, 1], [], []>} : vector<8x8xbf16>, vector<8x8xbf16>, vector<8x8xf32> -> vector<8x8xf32>
    %65 = vector.extract_strided_slice %1 {offsets = [0, 24], sizes = [8, 8], strides = [1, 1]} : vector<8x96xf32> to vector<8x8xf32>
    %cst_16 = arith.constant 0.353553385 : f32
    %66 = vector.broadcast %cst_16 : f32 to vector<8x8xf32>
    %67 = arith.mulf %65, %66 : vector<8x8xf32>
    %68 = arith.truncf %67 : vector<8x8xf32> to vector<8x8xbf16>
    %69 = vector.extract_strided_slice %1 {offsets = [0, 56], sizes = [8, 8], strides = [1, 1]} : vector<8x96xf32> to vector<8x8xf32>
    %70 = arith.truncf %69 : vector<8x8xf32> to vector<8x8xbf16>
    %71 = vector.extract_strided_slice %1 {offsets = [0, 88], sizes = [8, 8], strides = [1, 1]} : vector<8x96xf32> to vector<8x8xf32>
    %72 = arith.truncf %71 : vector<8x8xf32> to vector<8x8xbf16>
    %cst_17 = arith.constant dense<0.000000e+00> : vector<8x8xf32>
    %73 = tpu.matmul %68, %70, %cst_17 {dimension_numbers = #tpu.dot_dimension_numbers<[1], [1], [0], [0], [0, 0, 1, 0], [], []>} : vector<8x8xbf16>, vector<8x8xbf16>, vector<8x8xf32> -> vector<8x8xf32>
    %cst_18 = arith.constant dense<0xFF800000> : vector<8xf32>
    %74 = vector.multi_reduction <maximumf>, %73, %cst_18 [1] : vector<8x8xf32> to vector<8xf32>
    %75 = vector.shape_cast %74 : vector<8xf32> to vector<8x1xf32>
    %76 = vector.broadcast %75 : vector<8x1xf32> to vector<8x8xf32>
    %77 = arith.subf %73, %76 : vector<8x8xf32>
    %78 = math.exp %77 : vector<8x8xf32>
    %cst_19 = arith.constant dense<0.000000e+00> : vector<8xf32>
    %79 = vector.multi_reduction <add>, %78, %cst_19 [1] : vector<8x8xf32> to vector<8xf32>
    %80 = vector.shape_cast %79 : vector<8xf32> to vector<8x1xf32>
    %81 = tpu.reciprocal %80 {approx = true} : vector<8x1xf32> -> vector<8x1xf32>
    %82 = vector.broadcast %81 : vector<8x1xf32> to vector<8x8xf32>
    %83 = arith.mulf %78, %82 : vector<8x8xf32>
    %84 = arith.truncf %83 : vector<8x8xf32> to vector<8x8xbf16>
    %cst_20 = arith.constant dense<0.000000e+00> : vector<8x8xf32>
    %85 = tpu.matmul %84, %72, %cst_20 {dimension_numbers = #tpu.dot_dimension_numbers<[1], [0], [0], [1], [0, 0, 1, 1], [], []>} : vector<8x8xbf16>, vector<8x8xbf16>, vector<8x8xf32> -> vector<8x8xf32>
    %86 = tpu.concatenate %22, %43, %64, %85 in 1 : vector<8x8xf32>, vector<8x8xf32>, vector<8x8xf32>, vector<8x8xf32> -> vector<8x32xf32>
    %c0_21 = arith.constant 0 : index
    %c0_22 = arith.constant 0 : index
    %c0_23 = arith.constant 0 : index
    %87 = vector.load %arg2[%c0_21, %c0_22, %c0_23] : memref<1x8x32xf32, #tpu.memory_space<vmem>>, vector<1x8x32xf32>
    %88 = vector.shape_cast %87 : vector<1x8x32xf32> to vector<8x32xf32>
    %89 = vector.shape_cast %86 : vector<8x32xf32> to vector<1x8x32xf32>
    tpu.vector_store %arg2[%c0_21, %c0_22, %c0_23], %89 {strides = array<i32>} : memref<1x8x32xf32, #tpu.memory_space<vmem>>, vector<1x8x32xf32>,
    return
  }
  func.func @transform_0(%arg0: i32) -> (i32, i32, i32) {
    %c0_i32 = arith.constant 0 : i32
    %c0_i32_0 = arith.constant 0 : i32
    %c0_i32_1 = arith.constant 0 : i32
    return %arg0, %c0_i32, %c0_i32_0 : i32, i32, i32
  }
  func.func @transform_1(%arg0: i32) -> (i32, i32, i32) {
    %c0_i32 = arith.constant 0 : i32
    %c0_i32_0 = arith.constant 0 : i32
    %c0_i32_1 = arith.constant 0 : i32
    return %arg0, %c0_i32, %c0_i32_0 : i32, i32, i32
  }
}

module attributes {stable_mosaic.version = 11 : i64} {
  func.func @_outproj_add_ln_kernel(%arg0: i32, %arg1: memref<16x32xf32, #tpu.memory_space<vmem>>, %arg2: memref<16x32xf32, #tpu.memory_space<vmem>>, %arg3: memref<32x32xbf16, #tpu.memory_space<vmem>>, %arg4: memref<1x32xf32, #tpu.memory_space<vmem>>, %arg5: memref<1x32xf32, #tpu.memory_space<vmem>>, %arg6: memref<1x32xf32, #tpu.memory_space<vmem>>, %arg7: memref<16x32xf32, #tpu.memory_space<vmem>>) attributes {dimension_semantics = [#tpu.dimension_semantics<parallel>], iteration_bounds = array<i64: 1>, scalar_prefetch = 0 : i64, scratch_operands = 0 : i64, tpu.core_type = #tpu.core_type<tc>, window_params = [{transform_indices = @transform_0, window_bounds = array<i64: 16, 32>}, {transform_indices = @transform_1, window_bounds = array<i64: 16, 32>}, {pipeline_mode = #tpu.pipeline_mode<synchronous>, transform_indices = @transform_2, window_bounds = array<i64: 32, 32>}, {pipeline_mode = #tpu.pipeline_mode<synchronous>, transform_indices = @transform_3, window_bounds = array<i64: 1, 32>}, {pipeline_mode = #tpu.pipeline_mode<synchronous>, transform_indices = @transform_4, window_bounds = array<i64: 1, 32>}, {pipeline_mode = #tpu.pipeline_mode<synchronous>, transform_indices = @transform_5, window_bounds = array<i64: 1, 32>}, {transform_indices = @transform_6, window_bounds = array<i64: 16, 32>}]} {
    %c0 = arith.constant 0 : index
    %c0_0 = arith.constant 0 : index
    %0 = vector.load %arg1[%c0, %c0_0] : memref<16x32xf32, #tpu.memory_space<vmem>>, vector<16x32xf32>
    %1 = arith.truncf %0 : vector<16x32xf32> to vector<16x32xbf16>
    %c0_1 = arith.constant 0 : index
    %c0_2 = arith.constant 0 : index
    %2 = vector.load %arg3[%c0_1, %c0_2] : memref<32x32xbf16, #tpu.memory_space<vmem>>, vector<32x32xbf16>
    %cst = arith.constant dense<0.000000e+00> : vector<16x32xf32>
    %3 = tpu.matmul %1, %2, %cst {dimension_numbers = #tpu.dot_dimension_numbers<[1], [0], [0], [1], [0, 0, 1, 1], [], []>} : vector<16x32xbf16>, vector<32x32xbf16>, vector<16x32xf32> -> vector<16x32xf32>
    %c0_3 = arith.constant 0 : index
    %c0_4 = arith.constant 0 : index
    %4 = vector.load %arg4[%c0_3, %c0_4] : memref<1x32xf32, #tpu.memory_space<vmem>>, vector<1x32xf32>
    %5 = vector.broadcast %4 : vector<1x32xf32> to vector<16x32xf32>
    %6 = arith.addf %3, %5 : vector<16x32xf32>
    %c0_5 = arith.constant 0 : index
    %c0_6 = arith.constant 0 : index
    %7 = vector.load %arg2[%c0_5, %c0_6] : memref<16x32xf32, #tpu.memory_space<vmem>>, vector<16x32xf32>
    %8 = arith.addf %7, %6 : vector<16x32xf32>
    %cst_7 = arith.constant dense<0.000000e+00> : vector<16xf32>
    %9 = vector.multi_reduction <add>, %8, %cst_7 [1] : vector<16x32xf32> to vector<16xf32>
    %10 = vector.shape_cast %9 : vector<16xf32> to vector<16x1xf32>
    %cst_8 = arith.constant 3.200000e+01 : f32
    %11 = vector.broadcast %cst_8 : f32 to vector<16x1xf32>
    %12 = arith.divf %10, %11 : vector<16x1xf32>
    %13 = vector.broadcast %12 : vector<16x1xf32> to vector<16x32xf32>
    %14 = arith.subf %8, %13 : vector<16x32xf32>
    %15 = arith.mulf %14, %14 : vector<16x32xf32>
    %cst_9 = arith.constant dense<0.000000e+00> : vector<16xf32>
    %16 = vector.multi_reduction <add>, %15, %cst_9 [1] : vector<16x32xf32> to vector<16xf32>
    %17 = vector.shape_cast %16 : vector<16xf32> to vector<16x1xf32>
    %cst_10 = arith.constant 3.200000e+01 : f32
    %18 = vector.broadcast %cst_10 : f32 to vector<16x1xf32>
    %19 = arith.divf %17, %18 : vector<16x1xf32>
    %cst_11 = arith.constant 9.99999974E-6 : f32
    %20 = vector.broadcast %cst_11 : f32 to vector<16x1xf32>
    %21 = arith.addf %19, %20 : vector<16x1xf32>
    %22 = math.rsqrt %21 : vector<16x1xf32>
    %23 = vector.broadcast %22 : vector<16x1xf32> to vector<16x32xf32>
    %24 = arith.mulf %14, %23 : vector<16x32xf32>
    %c0_12 = arith.constant 0 : index
    %c0_13 = arith.constant 0 : index
    %25 = vector.load %arg5[%c0_12, %c0_13] : memref<1x32xf32, #tpu.memory_space<vmem>>, vector<1x32xf32>
    %26 = vector.broadcast %25 : vector<1x32xf32> to vector<16x32xf32>
    %27 = arith.mulf %24, %26 : vector<16x32xf32>
    %c0_14 = arith.constant 0 : index
    %c0_15 = arith.constant 0 : index
    %28 = vector.load %arg6[%c0_14, %c0_15] : memref<1x32xf32, #tpu.memory_space<vmem>>, vector<1x32xf32>
    %29 = vector.broadcast %28 : vector<1x32xf32> to vector<16x32xf32>
    %30 = arith.addf %27, %29 : vector<16x32xf32>
    %c0_16 = arith.constant 0 : index
    %c0_17 = arith.constant 0 : index
    %31 = vector.load %arg7[%c0_16, %c0_17] : memref<16x32xf32, #tpu.memory_space<vmem>>, vector<16x32xf32>
    tpu.vector_store %arg7[%c0_16, %c0_17], %30 {strides = array<i32>} : memref<16x32xf32, #tpu.memory_space<vmem>>, vector<16x32xf32>,
    return
  }
  func.func @transform_0(%arg0: i32) -> (i32, i32) {
    %c0_i32 = arith.constant 0 : i32
    %c0_i32_0 = arith.constant 0 : i32
    return %arg0, %c0_i32 : i32, i32
  }
  func.func @transform_1(%arg0: i32) -> (i32, i32) {
    %c0_i32 = arith.constant 0 : i32
    %c0_i32_0 = arith.constant 0 : i32
    return %arg0, %c0_i32 : i32, i32
  }
  func.func @transform_2(%arg0: i32) -> (i32, i32) {
    %c0_i32 = arith.constant 0 : i32
    %c0_i32_0 = arith.constant 0 : i32
    %c0_i32_1 = arith.constant 0 : i32
    return %c0_i32, %c0_i32_0 : i32, i32
  }
  func.func @transform_3(%arg0: i32) -> (i32, i32) {
    %c0_i32 = arith.constant 0 : i32
    %c0_i32_0 = arith.constant 0 : i32
    %c0_i32_1 = arith.constant 0 : i32
    return %c0_i32, %c0_i32_0 : i32, i32
  }
  func.func @transform_4(%arg0: i32) -> (i32, i32) {
    %c0_i32 = arith.constant 0 : i32
    %c0_i32_0 = arith.constant 0 : i32
    %c0_i32_1 = arith.constant 0 : i32
    return %c0_i32, %c0_i32_0 : i32, i32
  }
  func.func @transform_5(%arg0: i32) -> (i32, i32) {
    %c0_i32 = arith.constant 0 : i32
    %c0_i32_0 = arith.constant 0 : i32
    %c0_i32_1 = arith.constant 0 : i32
    return %c0_i32, %c0_i32_0 : i32, i32
  }
  func.func @transform_6(%arg0: i32) -> (i32, i32) {
    %c0_i32 = arith.constant 0 : i32
    %c0_i32_0 = arith.constant 0 : i32
    return %arg0, %c0_i32 : i32, i32
  }
}

module attributes {stable_mosaic.version = 11 : i64} {
  func.func @_ffn_add_ln_kernel(%arg0: i32, %arg1: memref<16x32xf32, #tpu.memory_space<vmem>>, %arg2: memref<32x64xbf16, #tpu.memory_space<vmem>>, %arg3: memref<1x64xf32, #tpu.memory_space<vmem>>, %arg4: memref<64x32xbf16, #tpu.memory_space<vmem>>, %arg5: memref<1x32xf32, #tpu.memory_space<vmem>>, %arg6: memref<1x32xf32, #tpu.memory_space<vmem>>, %arg7: memref<1x32xf32, #tpu.memory_space<vmem>>, %arg8: memref<16x32xf32, #tpu.memory_space<vmem>>) attributes {dimension_semantics = [#tpu.dimension_semantics<parallel>], iteration_bounds = array<i64: 1>, scalar_prefetch = 0 : i64, scratch_operands = 0 : i64, tpu.core_type = #tpu.core_type<tc>, window_params = [{transform_indices = @transform_0, window_bounds = array<i64: 16, 32>}, {pipeline_mode = #tpu.pipeline_mode<synchronous>, transform_indices = @transform_1, window_bounds = array<i64: 32, 64>}, {pipeline_mode = #tpu.pipeline_mode<synchronous>, transform_indices = @transform_2, window_bounds = array<i64: 1, 64>}, {pipeline_mode = #tpu.pipeline_mode<synchronous>, transform_indices = @transform_3, window_bounds = array<i64: 64, 32>}, {pipeline_mode = #tpu.pipeline_mode<synchronous>, transform_indices = @transform_4, window_bounds = array<i64: 1, 32>}, {pipeline_mode = #tpu.pipeline_mode<synchronous>, transform_indices = @transform_5, window_bounds = array<i64: 1, 32>}, {pipeline_mode = #tpu.pipeline_mode<synchronous>, transform_indices = @transform_6, window_bounds = array<i64: 1, 32>}, {transform_indices = @transform_7, window_bounds = array<i64: 16, 32>}]} {
    %c0 = arith.constant 0 : index
    %c0_0 = arith.constant 0 : index
    %0 = vector.load %arg1[%c0, %c0_0] : memref<16x32xf32, #tpu.memory_space<vmem>>, vector<16x32xf32>
    %1 = arith.truncf %0 : vector<16x32xf32> to vector<16x32xbf16>
    %c0_1 = arith.constant 0 : index
    %c0_2 = arith.constant 0 : index
    %2 = vector.load %arg2[%c0_1, %c0_2] : memref<32x64xbf16, #tpu.memory_space<vmem>>, vector<32x64xbf16>
    %cst = arith.constant dense<0.000000e+00> : vector<16x64xf32>
    %3 = tpu.matmul %1, %2, %cst {dimension_numbers = #tpu.dot_dimension_numbers<[1], [0], [0], [1], [0, 0, 1, 1], [], []>} : vector<16x32xbf16>, vector<32x64xbf16>, vector<16x64xf32> -> vector<16x64xf32>
    %c0_3 = arith.constant 0 : index
    %c0_4 = arith.constant 0 : index
    %4 = vector.load %arg3[%c0_3, %c0_4] : memref<1x64xf32, #tpu.memory_space<vmem>>, vector<1x64xf32>
    %5 = vector.broadcast %4 : vector<1x64xf32> to vector<16x64xf32>
    %6 = arith.addf %3, %5 : vector<16x64xf32>
    %cst_5 = arith.constant 0.000000e+00 : f32
    %7 = vector.broadcast %cst_5 : f32 to vector<16x64xf32>
    %8 = arith.maximumf %6, %7 : vector<16x64xf32>
    %9 = arith.truncf %8 : vector<16x64xf32> to vector<16x64xbf16>
    %c0_6 = arith.constant 0 : index
    %c0_7 = arith.constant 0 : index
    %10 = vector.load %arg4[%c0_6, %c0_7] : memref<64x32xbf16, #tpu.memory_space<vmem>>, vector<64x32xbf16>
    %cst_8 = arith.constant dense<0.000000e+00> : vector<16x32xf32>
    %11 = tpu.matmul %9, %10, %cst_8 {dimension_numbers = #tpu.dot_dimension_numbers<[1], [0], [0], [1], [0, 0, 1, 1], [], []>} : vector<16x64xbf16>, vector<64x32xbf16>, vector<16x32xf32> -> vector<16x32xf32>
    %c0_9 = arith.constant 0 : index
    %c0_10 = arith.constant 0 : index
    %12 = vector.load %arg5[%c0_9, %c0_10] : memref<1x32xf32, #tpu.memory_space<vmem>>, vector<1x32xf32>
    %13 = vector.broadcast %12 : vector<1x32xf32> to vector<16x32xf32>
    %14 = arith.addf %11, %13 : vector<16x32xf32>
    %15 = arith.addf %0, %14 : vector<16x32xf32>
    %cst_11 = arith.constant dense<0.000000e+00> : vector<16xf32>
    %16 = vector.multi_reduction <add>, %15, %cst_11 [1] : vector<16x32xf32> to vector<16xf32>
    %17 = vector.shape_cast %16 : vector<16xf32> to vector<16x1xf32>
    %cst_12 = arith.constant 3.200000e+01 : f32
    %18 = vector.broadcast %cst_12 : f32 to vector<16x1xf32>
    %19 = arith.divf %17, %18 : vector<16x1xf32>
    %20 = vector.broadcast %19 : vector<16x1xf32> to vector<16x32xf32>
    %21 = arith.subf %15, %20 : vector<16x32xf32>
    %22 = arith.mulf %21, %21 : vector<16x32xf32>
    %cst_13 = arith.constant dense<0.000000e+00> : vector<16xf32>
    %23 = vector.multi_reduction <add>, %22, %cst_13 [1] : vector<16x32xf32> to vector<16xf32>
    %24 = vector.shape_cast %23 : vector<16xf32> to vector<16x1xf32>
    %cst_14 = arith.constant 3.200000e+01 : f32
    %25 = vector.broadcast %cst_14 : f32 to vector<16x1xf32>
    %26 = arith.divf %24, %25 : vector<16x1xf32>
    %cst_15 = arith.constant 9.99999974E-6 : f32
    %27 = vector.broadcast %cst_15 : f32 to vector<16x1xf32>
    %28 = arith.addf %26, %27 : vector<16x1xf32>
    %29 = math.rsqrt %28 : vector<16x1xf32>
    %30 = vector.broadcast %29 : vector<16x1xf32> to vector<16x32xf32>
    %31 = arith.mulf %21, %30 : vector<16x32xf32>
    %c0_16 = arith.constant 0 : index
    %c0_17 = arith.constant 0 : index
    %32 = vector.load %arg6[%c0_16, %c0_17] : memref<1x32xf32, #tpu.memory_space<vmem>>, vector<1x32xf32>
    %33 = vector.broadcast %32 : vector<1x32xf32> to vector<16x32xf32>
    %34 = arith.mulf %31, %33 : vector<16x32xf32>
    %c0_18 = arith.constant 0 : index
    %c0_19 = arith.constant 0 : index
    %35 = vector.load %arg7[%c0_18, %c0_19] : memref<1x32xf32, #tpu.memory_space<vmem>>, vector<1x32xf32>
    %36 = vector.broadcast %35 : vector<1x32xf32> to vector<16x32xf32>
    %37 = arith.addf %34, %36 : vector<16x32xf32>
    %c0_20 = arith.constant 0 : index
    %c0_21 = arith.constant 0 : index
    %38 = vector.load %arg8[%c0_20, %c0_21] : memref<16x32xf32, #tpu.memory_space<vmem>>, vector<16x32xf32>
    tpu.vector_store %arg8[%c0_20, %c0_21], %37 {strides = array<i32>} : memref<16x32xf32, #tpu.memory_space<vmem>>, vector<16x32xf32>,
    return
  }
  func.func @transform_0(%arg0: i32) -> (i32, i32) {
    %c0_i32 = arith.constant 0 : i32
    %c0_i32_0 = arith.constant 0 : i32
    return %arg0, %c0_i32 : i32, i32
  }
  func.func @transform_1(%arg0: i32) -> (i32, i32) {
    %c0_i32 = arith.constant 0 : i32
    %c0_i32_0 = arith.constant 0 : i32
    %c0_i32_1 = arith.constant 0 : i32
    return %c0_i32, %c0_i32_0 : i32, i32
  }
  func.func @transform_2(%arg0: i32) -> (i32, i32) {
    %c0_i32 = arith.constant 0 : i32
    %c0_i32_0 = arith.constant 0 : i32
    %c0_i32_1 = arith.constant 0 : i32
    return %c0_i32, %c0_i32_0 : i32, i32
  }
  func.func @transform_3(%arg0: i32) -> (i32, i32) {
    %c0_i32 = arith.constant 0 : i32
    %c0_i32_0 = arith.constant 0 : i32
    %c0_i32_1 = arith.constant 0 : i32
    return %c0_i32, %c0_i32_0 : i32, i32
  }
  func.func @transform_4(%arg0: i32) -> (i32, i32) {
    %c0_i32 = arith.constant 0 : i32
    %c0_i32_0 = arith.constant 0 : i32
    %c0_i32_1 = arith.constant 0 : i32
    return %c0_i32, %c0_i32_0 : i32, i32
  }
  func.func @transform_5(%arg0: i32) -> (i32, i32) {
    %c0_i32 = arith.constant 0 : i32
    %c0_i32_0 = arith.constant 0 : i32
    %c0_i32_1 = arith.constant 0 : i32
    return %c0_i32, %c0_i32_0 : i32, i32
  }
  func.func @transform_6(%arg0: i32) -> (i32, i32) {
    %c0_i32 = arith.constant 0 : i32
    %c0_i32_0 = arith.constant 0 : i32
    %c0_i32_1 = arith.constant 0 : i32
    return %c0_i32, %c0_i32_0 : i32, i32
  }
  func.func @transform_7(%arg0: i32) -> (i32, i32) {
    %c0_i32 = arith.constant 0 : i32
    %c0_i32_0 = arith.constant 0 : i32
    return %arg0, %c0_i32 : i32, i32
  }
}

</mosaic_0001>

<llo_original>
// kernel: self_attention_module_forward.4
$region0: #{self_attention_module_forward.4}
  #allocation0 [shape = 'u32[]', space=smem, size = 0x4, offset = 0x4, fixed_abs, tag = 'smem constant byte address 0x4 - core index']
  #allocation1 [shape = 'u32[144,128]{1,0:T(1,128)}', space=vmem, size = 0x12000, scoped, tag = 'internal scratch']
  %s0 = inlined_call_operand.vmem [shape: f32[16,32], index: 0, kind: input, shape index: {}]
  %s1 = inlined_call_operand.vmem [shape: bf16[32,96], index: 1, kind: input, shape index: {}]
  %s2 = inlined_call_operand.vmem [shape: f32[1,96], index: 2, kind: input, shape index: {}]
  %s3 = inlined_call_operand.vmem [shape: f32[16,96], index: 3, kind: output, shape index: {}]
  %s4 = sld [smem:[#allocation0]]
  $region22: #{self_attention_module_forward.4} parent=0
    _
  %s6 = ssub.s32 1, %s4
  %s7 = scalar_select 0, %s6, %s4
  // Predicated region
  $region2: #{self_attention_module_forward.4} parent=0 // pred_check
    _
  $region3: #{self_attention_module_forward.4} parent=0 // pred_check_branch
    %9 = sbr.rel (0) target = $region5
  $region4: #{self_attention_module_forward.4} parent=0 // pred_region
    _
  $region5: #{self_attention_module_forward.4} parent=0 // pred_fallthru
    _
  // Predicated region
  $region6: #{self_attention_module_forward.4} parent=0 // pred_check
    _
  $region7: #{self_attention_module_forward.4} parent=0 // pred_check_branch
    %11 = sbr.rel (0) target = $region9
  $region8: #{self_attention_module_forward.4} parent=0 // pred_region
    _
  $region9: #{self_attention_module_forward.4} parent=0 // pred_fallthru
    _
  // Predicated region
  $region10: #{self_attention_module_forward.4} parent=0 // pred_check
    _
  $region11: #{self_attention_module_forward.4} parent=0 // pred_check_branch
    %13 = sbr.rel (0) target = $region13
  $region12: #{self_attention_module_forward.4} parent=0 // pred_region
    _
  $region13: #{self_attention_module_forward.4} parent=0 // pred_fallthru
    _
  %v15 = vld [vmem:[%s0] sm:$0xff]
  %v16 = vld [vmem:[%s0 + $0x8] sm:$0xff]
  %v17 = vpack.c.bf16 %v16, %v15
  %v18 = vld [vmem:[%s1] sm:$0xf]
  %v19 = vld [vmem:[%s1 + $0x4] sm:$0xf]
  %v20 = vld [vmem:[%s1 + $0x8] sm:$0xf]
  %v21 = vld [vmem:[%s1 + $0xc] sm:$0xf]
  %v22 = vld [vmem:[%s2] sm:$0x1]
  %v24 = vlaneseq
  %v25 = vshrl.u32 %v24, 7
  %v26 = vsub.s32 0, %v25
  %v27 = vrot.slane %v22, %v26
  %v33 = vunpack.c.l.b16 %v18
  %v34 = vunpack.c.l.b16 %v19
  %v35 = vunpack.c.l.b16 %v20
  %v36 = vunpack.c.l.b16 %v21
  %v37 = vpack.c.b16 %v34, %v33
  %v38 = vpack.c.b16 %v36, %v35
  %vm41 = vcmask 261120
  %v43 = vsel %vm41, %v17, 0
  %45 = vmatprep.subr.bf16.mxu0 0
  %46 = vmatpush1.bf16.msra.mxu0 %v37
  %47 = vmatprep.subr.bf16.mxu0 0
  %48 = vmatpush1.bf16.msra.mxu0 %v38
  %49 = vmatprep.subr.bf16.mxu0 0
  %50 = vmatpush1.bf16.msra.mxu0 0
  %51 = vmatprep.subr.bf16.mxu0 0
  %52 = vmatpush1.bf16.msra.mxu0 0
  %53 = vmatprep.subr.bf16.mxu0 0
  %54 = vmatpush1.bf16.msra.mxu0 0
  %55 = vmatprep.subr.bf16.mxu0 0
  %56 = vmatpush1.bf16.msra.mxu0 0
  %57 = vmatprep.subr.bf16.mxu0 0
  %58 = vmatpush1.bf16.msra.mxu0 0
  %59 = vmatprep.subr.bf16.mxu0 0
  %60 = vmatpush1.bf16.msra.mxu0 0
  %61 = vmatprep.subr.bf16.mxu0 0
  %62 = vmatpush1.bf16.msra.mxu0 0
  %63 = vmatprep.subr.bf16.mxu0 0
  %64 = vmatpush1.bf16.msra.mxu0 0
  %65 = vmatprep.subr.bf16.mxu0 0
  %66 = vmatpush1.bf16.msra.mxu0 0
  %67 = vmatprep.subr.bf16.mxu0 0
  %68 = vmatpush1.bf16.msra.mxu0 0
  %69 = vmatprep.subr.bf16.mxu0 0
  %70 = vmatpush1.bf16.msra.mxu0 0
  %71 = vmatprep.subr.bf16.mxu0 0
  %72 = vmatpush1.bf16.msra.mxu0 0
  %73 = vmatprep.subr.bf16.mxu0 0
  %74 = vmatpush1.bf16.msra.mxu0 0
  %75 = vmatprep.subr.bf16.mxu0 0
  %76 = vmatpush1.bf16.msra.mxu0 0
  %77 = vmatprep.mubr.bf16.mxu0 0
  %78 = vmatmul.mubr.bf16.gmra.mrb[0].mxu0 %v43
  %v79 = vpop.f32.mrb[0].mxu0
  %v80 = vadd.f32 %v27, %v79
  %v81 = vpop.f32.mrb[0].mxu0
  %v82 = vpop.f32.mrb[0].mxu0
  %v83 = vadd.f32 %v27, %v82
  %v84 = vpop.f32.mrb[0].mxu0
  %85 = vdwg.mxu0
  %vm86 = vcmask 785408
  %87 = vst.msk [vmem:[%s3] sm:$0xff] %vm86, %v80
  %88 = vst.msk [vmem:[%s3 + $0x8] sm:$0xff] %vm86, %v83
  // Predicated region
  $region14: #{self_attention_module_forward.4} parent=0 // pred_check
    _
  $region15: #{self_attention_module_forward.4} parent=0 // pred_check_branch
    %90 = sbr.rel (0) target = $region17
  $region16: #{self_attention_module_forward.4} parent=0 // pred_region
    _
  $region17: #{self_attention_module_forward.4} parent=0 // pred_fallthru
    _
  // Predicated region
  $region18: #{self_attention_module_forward.4} parent=0 // pred_check
    _
  $region19: #{self_attention_module_forward.4} parent=0 // pred_check_branch
    %92 = sbr.rel (0) target = $region21
  $region20: #{self_attention_module_forward.4} parent=0 // pred_region
    _
  $region21: #{self_attention_module_forward.4} parent=0 // pred_fallthru
    _

// kernel: self_attention_module_forward.6
$region0: #{self_attention_module_forward.6}
  #allocation0 [shape = 'u32[]', space=smem, size = 0x4, offset = 0x4, fixed_abs, tag = 'smem constant byte address 0x4 - core index']
  #allocation1 [shape = 'u32[144,128]{1,0:T(1,128)}', space=vmem, size = 0x12000, scoped, tag = 'internal scratch']
  %s0 = inlined_call_operand.vmem [shape: f32[16,32], index: 0, kind: input, shape index: {}]
  %s1 = inlined_call_operand.vmem [shape: f32[16,32], index: 1, kind: input, shape index: {}]
  %s2 = inlined_call_operand.vmem [shape: bf16[32,32], index: 2, kind: input, shape index: {}]
  %s3 = inlined_call_operand.vmem [shape: f32[1,32], index: 3, kind: input, shape index: {}]
  %s4 = inlined_call_operand.vmem [shape: f32[1,32], index: 4, kind: input, shape index: {}]
  %s5 = inlined_call_operand.vmem [shape: f32[1,32], index: 5, kind: input, shape index: {}]
  %s6 = inlined_call_operand.vmem [shape: f32[16,32], index: 6, kind: output, shape index: {}]
  %s7 = sld [smem:[#allocation0]]
  $region34: #{self_attention_module_forward.6} parent=0
    _
  %s9 = ssub.s32 1, %s7
  %s10 = scalar_select 0, %s9, %s7
  // Predicated region
  $region2: #{self_attention_module_forward.6} parent=0 // pred_check
    _
  $region3: #{self_attention_module_forward.6} parent=0 // pred_check_branch
    %12 = sbr.rel (0) target = $region5
  $region4: #{self_attention_module_forward.6} parent=0 // pred_region
    _
  $region5: #{self_attention_module_forward.6} parent=0 // pred_fallthru
    _
  // Predicated region
  $region6: #{self_attention_module_forward.6} parent=0 // pred_check
    _
  $region7: #{self_attention_module_forward.6} parent=0 // pred_check_branch
    %14 = sbr.rel (0) target = $region9
  $region8: #{self_attention_module_forward.6} parent=0 // pred_region
    _
  $region9: #{self_attention_module_forward.6} parent=0 // pred_fallthru
    _
  // Predicated region
  $region10: #{self_attention_module_forward.6} parent=0 // pred_check
    _
  $region11: #{self_attention_module_forward.6} parent=0 // pred_check_branch
    %16 = sbr.rel (0) target = $region13
  $region12: #{self_attention_module_forward.6} parent=0 // pred_region
    _
  $region13: #{self_attention_module_forward.6} parent=0 // pred_fallthru
    _
  // Predicated region
  $region14: #{self_attention_module_forward.6} parent=0 // pred_check
    _
  $region15: #{self_attention_module_forward.6} parent=0 // pred_check_branch
    %18 = sbr.rel (0) target = $region17
  $region16: #{self_attention_module_forward.6} parent=0 // pred_region
    _
  $region17: #{self_attention_module_forward.6} parent=0 // pred_fallthru
    _
  // Predicated region
  $region18: #{self_attention_module_forward.6} parent=0 // pred_check
    _
  $region19: #{self_attention_module_forward.6} parent=0 // pred_check_branch
    %20 = sbr.rel (0) target = $region21
  $region20: #{self_attention_module_forward.6} parent=0 // pred_region
    _
  $region21: #{self_attention_module_forward.6} parent=0 // pred_fallthru
    _
  // Predicated region
  $region22: #{self_attention_module_forward.6} parent=0 // pred_check
    _
  $region23: #{self_attention_module_forward.6} parent=0 // pred_check_branch
    %22 = sbr.rel (0) target = $region25
  $region24: #{self_attention_module_forward.6} parent=0 // pred_region
    _
  $region25: #{self_attention_module_forward.6} parent=0 // pred_fallthru
    _
  %v24 = vld [vmem:[%s0] sm:$0xff]
  %v25 = vld [vmem:[%s0 + $0x8] sm:$0xff]
  %v26 = vpack.c.bf16 %v25, %v24
  %v27 = vld [vmem:[%s2] sm:$0xf]
  %v28 = vld [vmem:[%s2 + $0x4] sm:$0xf]
  %v29 = vld [vmem:[%s2 + $0x8] sm:$0xf]
  %v30 = vld [vmem:[%s2 + $0xc] sm:$0xf]
  %v31 = vld [vmem:[%s3] sm:$0x1]
  %v33 = vlaneseq
  %v34 = vshrl.u32 %v33, 7
  %v35 = vsub.s32 0, %v34
  %v36 = vrot.slane %v31, %v35
  %v42 = vunpack.c.l.b16 %v27
  %v43 = vunpack.c.l.b16 %v28
  %v44 = vunpack.c.l.b16 %v29
  %v45 = vunpack.c.l.b16 %v30
  %v46 = vpack.c.b16 %v43, %v42
  %v47 = vpack.c.b16 %v45, %v44
  %vm50 = vcmask 261120
  %v52 = vsel %vm50, %v26, 0
  %54 = vmatprep.subr.bf16.mxu0 0
  %55 = vmatpush1.bf16.msra.mxu0 %v46
  %56 = vmatprep.subr.bf16.mxu0 0
  %57 = vmatpush1.bf16.msra.mxu0 %v47
  %58 = vmatprep.subr.bf16.mxu0 0
  %59 = vmatpush1.bf16.msra.mxu0 0
  %60 = vmatprep.subr.bf16.mxu0 0
  %61 = vmatpush1.bf16.msra.mxu0 0
  %62 = vmatprep.subr.bf16.mxu0 0
  %63 = vmatpush1.bf16.msra.mxu0 0
  %64 = vmatprep.subr.bf16.mxu0 0
  %65 = vmatpush1.bf16.msra.mxu0 0
  %66 = vmatprep.subr.bf16.mxu0 0
  %67 = vmatpush1.bf16.msra.mxu0 0
  %68 = vmatprep.subr.bf16.mxu0 0
  %69 = vmatpush1.bf16.msra.mxu0 0
  %70 = vmatprep.subr.bf16.mxu0 0
  %71 = vmatpush1.bf16.msra.mxu0 0
  %72 = vmatprep.subr.bf16.mxu0 0
  %73 = vmatpush1.bf16.msra.mxu0 0
  %74 = vmatprep.subr.bf16.mxu0 0
  %75 = vmatpush1.bf16.msra.mxu0 0
  %76 = vmatprep.subr.bf16.mxu0 0
  %77 = vmatpush1.bf16.msra.mxu0 0
  %78 = vmatprep.subr.bf16.mxu0 0
  %79 = vmatpush1.bf16.msra.mxu0 0
  %80 = vmatprep.subr.bf16.mxu0 0
  %81 = vmatpush1.bf16.msra.mxu0 0
  %82 = vmatprep.subr.bf16.mxu0 0
  %83 = vmatpush1.bf16.msra.mxu0 0
  %84 = vmatprep.subr.bf16.mxu0 0
  %85 = vmatpush1.bf16.msra.mxu0 0
  %86 = vmatprep.mubr.bf16.mxu0 0
  %87 = vmatmul.mubr.bf16.gmra.mrb[0].mxu0 %v52
  %v88 = vpop.f32.mrb[0].mxu0
  %v89 = vadd.f32 %v36, %v88
  %v90 = vpop.f32.mrb[0].mxu0
  %v91 = vpop.f32.mrb[0].mxu0
  %v92 = vadd.f32 %v36, %v91
  %v93 = vpop.f32.mrb[0].mxu0
  %94 = vdwg.mxu0
  %v95 = vld [vmem:[%s1] sm:$0xff]
  %v96 = vld [vmem:[%s1 + $0x8] sm:$0xff]
  %v97 = vadd.f32 %v95, %v89
  %v98 = vadd.f32 %v96, %v92
  %v99 = vsel %vm50, %v97, 0.0
  %100 = vadd.xlane.f32.xlu0 %v99
  %v101 = vpop.xlane.xlu0 %100
  %v102 = vsel %vm50, %v98, 0.0
  %103 = vadd.xlane.f32.xlu0 %v102
  %v104 = vpop.xlane.xlu0 %103
  %v105 = vrcp.pop 32.0
  %v106 = vmul.f32 %v101, %v105
  %v107 = vmul.f32 %v104, %v105
  %v108 = vsub.f32 %v97, %v106
  %v109 = vsub.f32 %v98, %v107
  %v110 = vmul.f32 %v108, %v108
  %v111 = vmul.f32 %v109, %v109
  %v112 = vsel %vm50, %v110, 0.0
  %113 = vadd.xlane.f32.xlu0 %v112
  %v114 = vpop.xlane.xlu0 %113
  %v115 = vsel %vm50, %v111, 0.0
  %116 = vadd.xlane.f32.xlu0 %v115
  %v117 = vpop.xlane.xlu0 %116
  %v118 = vmul.f32 %v114, %v105
  %v119 = vmul.f32 %v117, %v105
  %v120 = vadd.f32 %v118, 1e-05
  %v121 = vadd.f32 %v119, 1e-05
  %v122 = vrsqrt.pop %v120
  %v123 = vrsqrt.pop %v121
  %v124 = vmul.f32 %v108, %v122
  %v125 = vmul.f32 %v109, %v123
  %v126 = vld [vmem:[%s4] sm:$0x1]
  %v128 = vlaneseq
  %v129 = vshrl.u32 %v128, 7
  %v130 = vsub.s32 0, %v129
  %v131 = vrot.slane %v126, %v130
  %v133 = vmul.f32 %v124, %v131
  %v134 = vmul.f32 %v125, %v131
  %v135 = vld [vmem:[%s5] sm:$0x1]
  %v137 = vlaneseq
  %v138 = vshrl.u32 %v137, 7
  %v139 = vsub.s32 0, %v138
  %v140 = vrot.slane %v135, %v139
  %v142 = vadd.f32 %v133, %v140
  %v143 = vadd.f32 %v134, %v140
  %144 = vst.msk [vmem:[%s6] sm:$0xff] %vm50, %v142
  %145 = vst.msk [vmem:[%s6 + $0x8] sm:$0xff] %vm50, %v143
  // Predicated region
  $region26: #{self_attention_module_forward.6} parent=0 // pred_check
    _
  $region27: #{self_attention_module_forward.6} parent=0 // pred_check_branch
    %147 = sbr.rel (0) target = $region29
  $region28: #{self_attention_module_forward.6} parent=0 // pred_region
    _
  $region29: #{self_attention_module_forward.6} parent=0 // pred_fallthru
    _
  // Predicated region
  $region30: #{self_attention_module_forward.6} parent=0 // pred_check
    _
  $region31: #{self_attention_module_forward.6} parent=0 // pred_check_branch
    %149 = sbr.rel (0) target = $region33
  $region32: #{self_attention_module_forward.6} parent=0 // pred_region
    _
  $region33: #{self_attention_module_forward.6} parent=0 // pred_fallthru
    _

// kernel: self_attention_module_forward.5
$region0: #{self_attention_module_forward.5}
  #allocation0 [shape = 'u32[]', space=smem, size = 0x4, offset = 0x4, fixed_abs, tag = 'smem constant byte address 0x4 - core index']
  #allocation1 [shape = 'u32[144,128]{1,0:T(1,128)}', space=vmem, size = 0x12000, scoped, tag = 'internal scratch']
  %s0 = inlined_call_operand.vmem [shape: f32[2,8,96], index: 0, kind: input, shape index: {}]
  %s1 = inlined_call_operand.vmem [shape: f32[2,8,32], index: 1, kind: output, shape index: {}]
  %s2 = sld [smem:[#allocation0]]
  $region37: #{self_attention_module_forward.5} parent=0
    _
  %s4 = ssub.s32 1, %s2
  %s5 = scalar_select 0, %s4, %s2
  loop: start=0, step=1, limit=4
  $region2: #{self_attention_module_forward.5} parent=0 // loop_pre_header
    _
  $region3: #{self_attention_module_forward.5} parent=0 // loop_header
    %s7 = sphi 0, %s11
    %p8 = scmp.ge.s32.totalorder %s7, 4
    %s17 = sphi 0, %s19
    %s20 = sphi 0, %s17
    %s21 = sphi 0, %s20
    %s37 = sphi 0, %s21
    %s43 = sphi 0, %s45
    %s46 = sphi 0, %s43
    %s47 = sphi 0, %s46
    %s63 = sphi 0, %s47
  $region4: #{self_attention_module_forward.5} parent=0 // loop_header_branch
    %10 = sbr.rel (%p8) target = $region8
  $region5: #{self_attention_module_forward.5} parent=0 // loop_body
    %s12 = ssub.s32 %s7, 1
    %s13 = ssub.s32 %s7, 2
    %s14 = sadd.s32 %s7, 1
    %s15 = ssub.s32 %s7, %s14
    %p16 = scmp.eq.s32.totalorder %s15, 0
    %s18 = sadd.s32 %s17, 1
    %s19 = scalar_select %p16, %s17, %s18
    %p22 = pneg %p16
    %p23 = scmp.eq.s32.totalorder %s7, 1
    %p24 = por %p22, %p23
    %p25 = scmp.ne.s32.totalorder %s17, %s20
    %p26 = scmp.eq.s32.totalorder %s7, 0
    %p27 = por %p25, %p26
    %p28 = scmp.ne.s32.totalorder %s17, %s20
    %p29 = scmp.eq.s32.totalorder %s12, 1
    %p30 = por %p28, %p29
    %p31 = scmp.ne.s32.totalorder %s20, %s21
    %p32 = scmp.eq.s32.totalorder %s12, 0
    %p33 = por %p31, %p32
    %p34 = scmp.ne.s32.totalorder %s20, %s21
    %p35 = scmp.eq.s32.totalorder %s13, 1
    %p36 = por %p34, %p35
    %p38 = scmp.ne.s32.totalorder %s21, %s37
    %p39 = scmp.eq.s32.totalorder %s13, 0
    %p40 = por %p38, %p39
    %s41 = ssub.s32 %s7, %s14
    %p42 = scmp.eq.s32.totalorder %s41, 0
    %s44 = sadd.s32 %s43, 1
    %s45 = scalar_select %p42, %s43, %s44
    %p48 = pneg %p42
    %p49 = scmp.eq.s32.totalorder %s7, 1
    %p50 = por %p48, %p49
    %p51 = scmp.ne.s32.totalorder %s43, %s46
    %p52 = scmp.eq.s32.totalorder %s7, 0
    %p53 = por %p51, %p52
    %p54 = scmp.ne.s32.totalorder %s43, %s46
    %p55 = scmp.eq.s32.totalorder %s12, 1
    %p56 = por %p54, %p55
    %p57 = scmp.ne.s32.totalorder %s46, %s47
    %p58 = scmp.eq.s32.totalorder %s12, 0
    %p59 = por %p57, %p58
    %p60 = scmp.ne.s32.totalorder %s46, %s47
    %p61 = scmp.eq.s32.totalorder %s13, 1
    %p62 = por %p60, %p61
    %p64 = scmp.ne.s32.totalorder %s47, %s63
    %p65 = scmp.eq.s32.totalorder %s13, 0
    %p66 = por %p64, %p65
    %p67 = scmp.le.s32.totalorder 1, %s7
    %p68 = scmp.lt.s32.totalorder %s7, 3
    %p69 = pnand %p67, %p68
    %p70 = pneg %p69
    // Predicated region
    $region9: #{self_attention_module_forward.5} parent=5 // pred_check
      _
    $region10: #{self_attention_module_forward.5} parent=5 // pred_check_branch
      %72 = sbr.rel (%p69) target = $region12
    $region11: #{self_attention_module_forward.5} parent=5 // pred_region
      %s73 = ssub.s32 %s7, 1
    $region12: #{self_attention_module_forward.5} parent=5 // pred_fallthru
      _
    %p74 = scmp.lt.s32.totalorder %s7, 2
    // Predicated region
    $region13: #{self_attention_module_forward.5} parent=5 // pred_check
      %p75 = pneg %p74
    $region14: #{self_attention_module_forward.5} parent=5 // pred_check_branch
      %77 = sbr.rel (%p75) target = $region16
    $region15: #{self_attention_module_forward.5} parent=5 // pred_region
      // Predicated region
      $region17: #{self_attention_module_forward.5} parent=15 // pred_check
        %p78 = pneg %p27
      $region18: #{self_attention_module_forward.5} parent=15 // pred_check_branch
        %80 = sbr.rel (%p78) target = $region20
      $region19: #{self_attention_module_forward.5} parent=15 // pred_region
        %p81 = scmp.lt.s32.totalorder %s7, 1
        %s82 = scalar_select %p81, %s7, 1
        %s83 = smul.addr %s82, 8
        %s84 = scalar_lea.vmem %s0, %s83
      $region20: #{self_attention_module_forward.5} parent=15 // pred_fallthru
        _
    $region16: #{self_attention_module_forward.5} parent=5 // pred_fallthru
      _
    %p85 = scmp.le.s32.totalorder 1, %s7
    %p86 = scmp.lt.s32.totalorder %s7, 3
    %p87 = pnand %p85, %p86
    %p88 = pneg %p87
    // Predicated region
    $region21: #{self_attention_module_forward.5} parent=5 // pred_check
      _
    $region22: #{self_attention_module_forward.5} parent=5 // pred_check_branch
      %90 = sbr.rel (%p87) target = $region24
    $region23: #{self_attention_module_forward.5} parent=5 // pred_region
      %s91 = ssub.s32 %s7, 1
      %p92 = scmp.lt.s32.totalorder %s12, 1
      %s93 = scalar_select %p92, %s12, 1
      %s94 = smul.addr %s93, 8
      %s95 = scalar_lea.vmem %s0, %s94
      %p96 = pneg %p33
      %p97 = pneg %p30
      %p98 = pneg %p59
      %p99 = pneg %p56
      %p100 = scmp.lt.s32.totalorder %s12, 1
      %s101 = scalar_select %p100, %s12, 1
      %s102 = smul.addr %s101, 8
      %s103 = scalar_lea.vmem %s1, %s102
      %p104 = scmp.lt.s32.totalorder %s12, 1
      %s105 = scalar_select %p104, %s12, 1
      %s106 = smul.addr %s105, 8
      %s107 = scalar_lea.vmem %s0, %s106
      %p108 = scmp.lt.s32.totalorder %s12, 1
      %s109 = scalar_select %p108, %s12, 1
      %s110 = smul.addr %s109, 8
      %s111 = scalar_lea.vmem %s1, %s110
      %v113 = vld [vmem:[%s107] sm:$0xff]
      %v114 = vmul.f32 %v113, 0.35355338
      %v115 = vpack.c.bf16 %v114, %v114
      %v116 = vpack.c.bf16 %v113, %v113
      %118 = vrot.lane.b32.xlu0 %v116, 96
      %v119 = vpop.permute.xlu0 %118
      %vm120 = vcmask 64512
      %v122 = vsel %vm120, %v115, 0
      %v125 = vsel %vm120, %v119, 0
      %127 = vmatprep.subr.bf16.mxu0 0
      %128 = vmatpush1.bf16.xpose.msra.mxu0 %v125
      %129 = vmatprep.subr.bf16.mxu0 0
      %130 = vmatpush1.bf16.xpose.msra.mxu0 0
      %131 = vmatprep.subr.bf16.mxu0 0
      %132 = vmatpush1.bf16.xpose.msra.mxu0 0
      %133 = vmatprep.subr.bf16.mxu0 0
      %134 = vmatpush1.bf16.xpose.msra.mxu0 0
      %135 = vmatprep.subr.bf16.mxu0 0
      %136 = vmatpush1.bf16.xpose.msra.mxu0 0
      %137 = vmatprep.subr.bf16.mxu0 0
      %138 = vmatpush1.bf16.xpose.msra.mxu0 0
      %139 = vmatprep.subr.bf16.mxu0 0
      %140 = vmatpush1.bf16.xpose.msra.mxu0 0
      %141 = vmatprep.subr.bf16.mxu0 0
      %142 = vmatpush1.bf16.xpose.msra.mxu0 0
      %143 = vmatprep.subr.bf16.mxu0 0
      %144 = vmatpush1.bf16.xpose.msra.mxu0 0
      %145 = vmatprep.subr.bf16.mxu0 0
      %146 = vmatpush1.bf16.xpose.msra.mxu0 0
      %147 = vmatprep.subr.bf16.mxu0 0
      %148 = vmatpush1.bf16.xpose.msra.mxu0 0
      %149 = vmatprep.subr.bf16.mxu0 0
      %150 = vmatpush1.bf16.xpose.msra.mxu0 0
      %151 = vmatprep.subr.bf16.mxu0 0
      %152 = vmatpush1.bf16.xpose.msra.mxu0 0
      %153 = vmatprep.subr.bf16.mxu0 0
      %154 = vmatpush1.bf16.xpose.msra.mxu0 0
      %155 = vmatprep.subr.bf16.mxu0 0
      %156 = vmatpush1.bf16.xpose.msra.mxu0 0
      %157 = vmatprep.subr.bf16.mxu0 0
      %158 = vmatpush1.bf16.xpose.msra.mxu0 0
      %159 = vmatprep.mubr.bf16.mxu0 0
      %160 = vmatmul.mubr.bf16.gmra.mrb[0].mxu0 %v122
      %v161 = vpop.f32.mrb[0].mxu0
      %v162 = vadd.f32 0.0, %v161
      %v163 = vpop.f32.mrb[0].mxu0
      %v164 = vpop.f32.mrb[0].mxu0
      %v165 = vpop.f32.mrb[0].mxu0
      %166 = vdwg.mxu0
      %v167 = vsel %vm120, %v162, -inf
      %168 = vmax.xlane.f32.xlu0 %v167
      %v169 = vpop.xlane.xlu0 %168
      %v170 = vsub.f32 %v162, %v169
      %v171 = vmul.f32 %v170, 1.442695
      %v172 = vpow.pop %v171
      %v173 = vsel %vm120, %v172, 0.0
      %174 = vadd.xlane.f32.xlu0 %v173
      %v175 = vpop.xlane.xlu0 %174
      %v176 = vrcp.pop %v175
      %v177 = vmul.f32 %v172, %v176
      %v178 = vpack.c.bf16 %v177, %v177
      %179 = vrot.lane.b32.xlu0 %v116, 64
      %v180 = vpop.permute.xlu0 %179
      %v182 = vsel %vm120, %v178, 0
      %vm184 = vcmask 1043456
      %v186 = vsel %vm184, %v180, 0
      %188 = vmatprep.subr.bf16.mxu0 0
      %189 = vmatpush1.bf16.msra.mxu0 %v186
      %190 = vmatprep.subr.bf16.mxu0 0
      %191 = vmatpush1.bf16.msra.mxu0 0
      %192 = vmatprep.subr.bf16.mxu0 0
      %193 = vmatpush1.bf16.msra.mxu0 0
      %194 = vmatprep.subr.bf16.mxu0 0
      %195 = vmatpush1.bf16.msra.mxu0 0
      %196 = vmatprep.subr.bf16.mxu0 0
      %197 = vmatpush1.bf16.msra.mxu0 0
      %198 = vmatprep.subr.bf16.mxu0 0
      %199 = vmatpush1.bf16.msra.mxu0 0
      %200 = vmatprep.subr.bf16.mxu0 0
      %201 = vmatpush1.bf16.msra.mxu0 0
      %202 = vmatprep.subr.bf16.mxu0 0
      %203 = vmatpush1.bf16.msra.mxu0 0
      %204 = vmatprep.subr.bf16.mxu0 0
      %205 = vmatpush1.bf16.msra.mxu0 0
      %206 = vmatprep.subr.bf16.mxu0 0
      %207 = vmatpush1.bf16.msra.mxu0 0
      %208 = vmatprep.subr.bf16.mxu0 0
      %209 = vmatpush1.bf16.msra.mxu0 0
      %210 = vmatprep.subr.bf16.mxu0 0
      %211 = vmatpush1.bf16.msra.mxu0 0
      %212 = vmatprep.subr.bf16.mxu0 0
      %213 = vmatpush1.bf16.msra.mxu0 0
      %214 = vmatprep.subr.bf16.mxu0 0
      %215 = vmatpush1.bf16.msra.mxu0 0
      %216 = vmatprep.subr.bf16.mxu0 0
      %217 = vmatpush1.bf16.msra.mxu0 0
      %218 = vmatprep.subr.bf16.mxu0 0
      %219 = vmatpush1.bf16.msra.mxu0 0
      %220 = vmatprep.mubr.bf16.mxu0 0
      %221 = vmatmul.mubr.bf16.gmra.mrb[0].mxu0 %v182
      %v222 = vpop.f32.mrb[0].mxu0
      %v223 = vadd.f32 0.0, %v222
      %v224 = vpop.f32.mrb[0].mxu0
      %v225 = vpop.f32.mrb[0].mxu0
      %v226 = vpop.f32.mrb[0].mxu0
      %227 = vdwg.mxu0
      %229 = vrot.lane.b32.xlu0 %v115, 120
      %v230 = vpop.permute.xlu0 %229
      %231 = vrot.lane.b32.xlu0 %v116, 88
      %v232 = vpop.permute.xlu0 %231
      %v234 = vsel %vm120, %v230, 0
      %v237 = vsel %vm120, %v232, 0
      %239 = vmatprep.subr.bf16.mxu0 0
      %240 = vmatpush1.bf16.xpose.msra.mxu0 %v237
      %241 = vmatprep.subr.bf16.mxu0 0
      %242 = vmatpush1.bf16.xpose.msra.mxu0 0
      %243 = vmatprep.subr.bf16.mxu0 0
      %244 = vmatpush1.bf16.xpose.msra.mxu0 0
      %245 = vmatprep.subr.bf16.mxu0 0
      %246 = vmatpush1.bf16.xpose.msra.mxu0 0
      %247 = vmatprep.subr.bf16.mxu0 0
      %248 = vmatpush1.bf16.xpose.msra.mxu0 0
      %249 = vmatprep.subr.bf16.mxu0 0
      %250 = vmatpush1.bf16.xpose.msra.mxu0 0
      %251 = vmatprep.subr.bf16.mxu0 0
      %252 = vmatpush1.bf16.xpose.msra.mxu0 0
      %253 = vmatprep.subr.bf16.mxu0 0
      %254 = vmatpush1.bf16.xpose.msra.mxu0 0
      %255 = vmatprep.subr.bf16.mxu0 0
      %256 = vmatpush1.bf16.xpose.msra.mxu0 0
      %257 = vmatprep.subr.bf16.mxu0 0
      %258 = vmatpush1.bf16.xpose.msra.mxu0 0
      %259 = vmatprep.subr.bf16.mxu0 0
      %260 = vmatpush1.bf16.xpose.msra.mxu0 0
      %261 = vmatprep.subr.bf16.mxu0 0
      %262 = vmatpush1.bf16.xpose.msra.mxu0 0
      %263 = vmatprep.subr.bf16.mxu0 0
      %264 = vmatpush1.bf16.xpose.msra.mxu0 0
      %265 = vmatprep.subr.bf16.mxu0 0
      %266 = vmatpush1.bf16.xpose.msra.mxu0 0
      %267 = vmatprep.subr.bf16.mxu0 0
      %268 = vmatpush1.bf16.xpose.msra.mxu0 0
      %269 = vmatprep.subr.bf16.mxu0 0
      %270 = vmatpush1.bf16.xpose.msra.mxu0 0
      %271 = vmatprep.mubr.bf16.mxu0 0
      %272 = vmatmul.mubr.bf16.gmra.mrb[0].mxu0 %v234
      %v273 = vpop.f32.mrb[0].mxu0
      %v274 = vadd.f32 0.0, %v273
      %v275 = vpop.f32.mrb[0].mxu0
      %v276 = vpop.f32.mrb[0].mxu0
      %v277 = vpop.f32.mrb[0].mxu0
      %278 = vdwg.mxu0
      %v279 = vsel %vm120, %v274, -inf
      %280 = vmax.xlane.f32.xlu0 %v279
      %v281 = vpop.xlane.xlu0 %280
      %v282 = vsub.f32 %v274, %v281
      %v283 = vmul.f32 %v282, 1.442695
      %v284 = vpow.pop %v283
      %v285 = vsel %vm120, %v284, 0.0
      %286 = vadd.xlane.f32.xlu0 %v285
      %v287 = vpop.xlane.xlu0 %286
      %v288 = vrcp.pop %v287
      %v289 = vmul.f32 %v284, %v288
      %v290 = vpack.c.bf16 %v289, %v289
      %291 = vrot.lane.b32.xlu0 %v116, 56
      %v292 = vpop.permute.xlu0 %291
      %v294 = vsel %vm120, %v290, 0
      %v297 = vsel %vm184, %v292, 0
      %299 = vmatprep.subr.bf16.mxu0 0
      %300 = vmatpush1.bf16.msra.mxu0 %v297
      %301 = vmatprep.subr.bf16.mxu0 0
      %302 = vmatpush1.bf16.msra.mxu0 0
      %303 = vmatprep.subr.bf16.mxu0 0
      %304 = vmatpush1.bf16.msra.mxu0 0
      %305 = vmatprep.subr.bf16.mxu0 0
      %306 = vmatpush1.bf16.msra.mxu0 0
      %307 = vmatprep.subr.bf16.mxu0 0
      %308 = vmatpush1.bf16.msra.mxu0 0
      %309 = vmatprep.subr.bf16.mxu0 0
      %310 = vmatpush1.bf16.msra.mxu0 0
      %311 = vmatprep.subr.bf16.mxu0 0
      %312 = vmatpush1.bf16.msra.mxu0 0
      %313 = vmatprep.subr.bf16.mxu0 0
      %314 = vmatpush1.bf16.msra.mxu0 0
      %315 = vmatprep.subr.bf16.mxu0 0
      %316 = vmatpush1.bf16.msra.mxu0 0
      %317 = vmatprep.subr.bf16.mxu0 0
      %318 = vmatpush1.bf16.msra.mxu0 0
      %319 = vmatprep.subr.bf16.mxu0 0
      %320 = vmatpush1.bf16.msra.mxu0 0
      %321 = vmatprep.subr.bf16.mxu0 0
      %322 = vmatpush1.bf16.msra.mxu0 0
      %323 = vmatprep.subr.bf16.mxu0 0
      %324 = vmatpush1.bf16.msra.mxu0 0
      %325 = vmatprep.subr.bf16.mxu0 0
      %326 = vmatpush1.bf16.msra.mxu0 0
      %327 = vmatprep.subr.bf16.mxu0 0
      %328 = vmatpush1.bf16.msra.mxu0 0
      %329 = vmatprep.subr.bf16.mxu0 0
      %330 = vmatpush1.bf16.msra.mxu0 0
      %331 = vmatprep.mubr.bf16.mxu0 0
      %332 = vmatmul.mubr.bf16.gmra.mrb[0].mxu0 %v294
      %v333 = vpop.f32.mrb[0].mxu0
      %v334 = vadd.f32 0.0, %v333
      %v335 = vpop.f32.mrb[0].mxu0
      %v336 = vpop.f32.mrb[0].mxu0
      %v337 = vpop.f32.mrb[0].mxu0
      %338 = vdwg.mxu0
      %339 = vrot.lane.b32.xlu0 %v115, 112
      %v340 = vpop.permute.xlu0 %339
      %341 = vrot.lane.b32.xlu0 %v116, 80
      %v342 = vpop.permute.xlu0 %341
      %v344 = vsel %vm120, %v340, 0
      %v347 = vsel %vm120, %v342, 0
      %349 = vmatprep.subr.bf16.mxu0 0
      %350 = vmatpush1.bf16.xpose.msra.mxu0 %v347
      %351 = vmatprep.subr.bf16.mxu0 0
      %352 = vmatpush1.bf16.xpose.msra.mxu0 0
      %353 = vmatprep.subr.bf16.mxu0 0
      %354 = vmatpush1.bf16.xpose.msra.mxu0 0
      %355 = vmatprep.subr.bf16.mxu0 0
      %356 = vmatpush1.bf16.xpose.msra.mxu0 0
      %357 = vmatprep.subr.bf16.mxu0 0
      %358 = vmatpush1.bf16.xpose.msra.mxu0 0
      %359 = vmatprep.subr.bf16.mxu0 0
      %360 = vmatpush1.bf16.xpose.msra.mxu0 0
      %361 = vmatprep.subr.bf16.mxu0 0
      %362 = vmatpush1.bf16.xpose.msra.mxu0 0
      %363 = vmatprep.subr.bf16.mxu0 0
      %364 = vmatpush1.bf16.xpose.msra.mxu0 0
      %365 = vmatprep.subr.bf16.mxu0 0
      %366 = vmatpush1.bf16.xpose.msra.mxu0 0
      %367 = vmatprep.subr.bf16.mxu0 0
      %368 = vmatpush1.bf16.xpose.msra.mxu0 0
      %369 = vmatprep.subr.bf16.mxu0 0
      %370 = vmatpush1.bf16.xpose.msra.mxu0 0
      %371 = vmatprep.subr.bf16.mxu0 0
      %372 = vmatpush1.bf16.xpose.msra.mxu0 0
      %373 = vmatprep.subr.bf16.mxu0 0
      %374 = vmatpush1.bf16.xpose.msra.mxu0 0
      %375 = vmatprep.subr.bf16.mxu0 0
      %376 = vmatpush1.bf16.xpose.msra.mxu0 0
      %377 = vmatprep.subr.bf16.mxu0 0
      %378 = vmatpush1.bf16.xpose.msra.mxu0 0
      %379 = vmatprep.subr.bf16.mxu0 0
      %380 = vmatpush1.bf16.xpose.msra.mxu0 0
      %381 = vmatprep.mubr.bf16.mxu0 0
      %382 = vmatmul.mubr.bf16.gmra.mrb[0].mxu0 %v344
      %v383 = vpop.f32.mrb[0].mxu0
      %v384 = vadd.f32 0.0, %v383
      %v385 = vpop.f32.mrb[0].mxu0
      %v386 = vpop.f32.mrb[0].mxu0
      %v387 = vpop.f32.mrb[0].mxu0
      %388 = vdwg.mxu0
      %v389 = vsel %vm120, %v384, -inf
      %390 = vmax.xlane.f32.xlu0 %v389
      %v391 = vpop.xlane.xlu0 %390
      %v392 = vsub.f32 %v384, %v391
      %v393 = vmul.f32 %v392, 1.442695
      %v394 = vpow.pop %v393
      %v395 = vsel %vm120, %v394, 0.0
      %396 = vadd.xlane.f32.xlu0 %v395
      %v397 = vpop.xlane.xlu0 %396
      %v398 = vrcp.pop %v397
      %v399 = vmul.f32 %v394, %v398
      %v400 = vpack.c.bf16 %v399, %v399
      %401 = vrot.lane.b32.xlu0 %v116, 48
      %v402 = vpop.permute.xlu0 %401
      %v404 = vsel %vm120, %v400, 0
      %v407 = vsel %vm184, %v402, 0
      %409 = vmatprep.subr.bf16.mxu0 0
      %410 = vmatpush1.bf16.msra.mxu0 %v407
      %411 = vmatprep.subr.bf16.mxu0 0
      %412 = vmatpush1.bf16.msra.mxu0 0
      %413 = vmatprep.subr.bf16.mxu0 0
      %414 = vmatpush1.bf16.msra.mxu0 0
      %415 = vmatprep.subr.bf16.mxu0 0
      %416 = vmatpush1.bf16.msra.mxu0 0
      %417 = vmatprep.subr.bf16.mxu0 0
      %418 = vmatpush1.bf16.msra.mxu0 0
      %419 = vmatprep.subr.bf16.mxu0 0
      %420 = vmatpush1.bf16.msra.mxu0 0
      %421 = vmatprep.subr.bf16.mxu0 0
      %422 = vmatpush1.bf16.msra.mxu0 0
      %423 = vmatprep.subr.bf16.mxu0 0
      %424 = vmatpush1.bf16.msra.mxu0 0
      %425 = vmatprep.subr.bf16.mxu0 0
      %426 = vmatpush1.bf16.msra.mxu0 0
      %427 = vmatprep.subr.bf16.mxu0 0
      %428 = vmatpush1.bf16.msra.mxu0 0
      %429 = vmatprep.subr.bf16.mxu0 0
      %430 = vmatpush1.bf16.msra.mxu0 0
      %431 = vmatprep.subr.bf16.mxu0 0
      %432 = vmatpush1.bf16.msra.mxu0 0
      %433 = vmatprep.subr.bf16.mxu0 0
      %434 = vmatpush1.bf16.msra.mxu0 0
      %435 = vmatprep.subr.bf16.mxu0 0
      %436 = vmatpush1.bf16.msra.mxu0 0
      %437 = vmatprep.subr.bf16.mxu0 0
      %438 = vmatpush1.bf16.msra.mxu0 0
      %439 = vmatprep.subr.bf16.mxu0 0
      %440 = vmatpush1.bf16.msra.mxu0 0
      %441 = vmatprep.mubr.bf16.mxu0 0
      %442 = vmatmul.mubr.bf16.gmra.mrb[0].mxu0 %v404
      %v443 = vpop.f32.mrb[0].mxu0
      %v444 = vadd.f32 0.0, %v443
      %v445 = vpop.f32.mrb[0].mxu0
      %v446 = vpop.f32.mrb[0].mxu0
      %v447 = vpop.f32.mrb[0].mxu0
      %448 = vdwg.mxu0
      %449 = vrot.lane.b32.xlu0 %v115, 104
      %v450 = vpop.permute.xlu0 %449
      %451 = vrot.lane.b32.xlu0 %v116, 72
      %v452 = vpop.permute.xlu0 %451
      %v454 = vsel %vm120, %v450, 0
      %v457 = vsel %vm120, %v452, 0
      %459 = vmatprep.subr.bf16.mxu0 0
      %460 = vmatpush1.bf16.xpose.msra.mxu0 %v457
      %461 = vmatprep.subr.bf16.mxu0 0
      %462 = vmatpush1.bf16.xpose.msra.mxu0 0
      %463 = vmatprep.subr.bf16.mxu0 0
      %464 = vmatpush1.bf16.xpose.msra.mxu0 0
      %465 = vmatprep.subr.bf16.mxu0 0
      %466 = vmatpush1.bf16.xpose.msra.mxu0 0
      %467 = vmatprep.subr.bf16.mxu0 0
      %468 = vmatpush1.bf16.xpose.msra.mxu0 0
      %469 = vmatprep.subr.bf16.mxu0 0
      %470 = vmatpush1.bf16.xpose.msra.mxu0 0
      %471 = vmatprep.subr.bf16.mxu0 0
      %472 = vmatpush1.bf16.xpose.msra.mxu0 0
      %473 = vmatprep.subr.bf16.mxu0 0
      %474 = vmatpush1.bf16.xpose.msra.mxu0 0
      %475 = vmatprep.subr.bf16.mxu0 0
      %476 = vmatpush1.bf16.xpose.msra.mxu0 0
      %477 = vmatprep.subr.bf16.mxu0 0
      %478 = vmatpush1.bf16.xpose.msra.mxu0 0
      %479 = vmatprep.subr.bf16.mxu0 0
      %480 = vmatpush1.bf16.xpose.msra.mxu0 0
      %481 = vmatprep.subr.bf16.mxu0 0
      %482 = vmatpush1.bf16.xpose.msra.mxu0 0
      %483 = vmatprep.subr.bf16.mxu0 0
      %484 = vmatpush1.bf16.xpose.msra.mxu0 0
      %485 = vmatprep.subr.bf16.mxu0 0
      %486 = vmatpush1.bf16.xpose.msra.mxu0 0
      %487 = vmatprep.subr.bf16.mxu0 0
      %488 = vmatpush1.bf16.xpose.msra.mxu0 0
      %489 = vmatprep.subr.bf16.mxu0 0
      %490 = vmatpush1.bf16.xpose.msra.mxu0 0
      %491 = vmatprep.mubr.bf16.mxu0 0
      %492 = vmatmul.mubr.bf16.gmra.mrb[0].mxu0 %v454
      %v493 = vpop.f32.mrb[0].mxu0
      %v494 = vadd.f32 0.0, %v493
      %v495 = vpop.f32.mrb[0].mxu0
      %v496 = vpop.f32.mrb[0].mxu0
      %v497 = vpop.f32.mrb[0].mxu0
      %498 = vdwg.mxu0
      %v499 = vsel %vm120, %v494, -inf
      %500 = vmax.xlane.f32.xlu0 %v499
      %v501 = vpop.xlane.xlu0 %500
      %v502 = vsub.f32 %v494, %v501
      %v503 = vmul.f32 %v502, 1.442695
      %v504 = vpow.pop %v503
      %v505 = vsel %vm120, %v504, 0.0
      %506 = vadd.xlane.f32.xlu0 %v505
      %v507 = vpop.xlane.xlu0 %506
      %v508 = vrcp.pop %v507
      %v509 = vmul.f32 %v504, %v508
      %v510 = vpack.c.bf16 %v509, %v509
      %511 = vrot.lane.b32.xlu0 %v116, 40
      %v512 = vpop.permute.xlu0 %511
      %v514 = vsel %vm120, %v510, 0
      %v517 = vsel %vm184, %v512, 0
      %519 = vmatprep.subr.bf16.mxu0 0
      %520 = vmatpush1.bf16.msra.mxu0 %v517
      %521 = vmatprep.subr.bf16.mxu0 0
      %522 = vmatpush1.bf16.msra.mxu0 0
      %523 = vmatprep.subr.bf16.mxu0 0
      %524 = vmatpush1.bf16.msra.mxu0 0
      %525 = vmatprep.subr.bf16.mxu0 0
      %526 = vmatpush1.bf16.msra.mxu0 0
      %527 = vmatprep.subr.bf16.mxu0 0
      %528 = vmatpush1.bf16.msra.mxu0 0
      %529 = vmatprep.subr.bf16.mxu0 0
      %530 = vmatpush1.bf16.msra.mxu0 0
      %531 = vmatprep.subr.bf16.mxu0 0
      %532 = vmatpush1.bf16.msra.mxu0 0
      %533 = vmatprep.subr.bf16.mxu0 0
      %534 = vmatpush1.bf16.msra.mxu0 0
      %535 = vmatprep.subr.bf16.mxu0 0
      %536 = vmatpush1.bf16.msra.mxu0 0
      %537 = vmatprep.subr.bf16.mxu0 0
      %538 = vmatpush1.bf16.msra.mxu0 0
      %539 = vmatprep.subr.bf16.mxu0 0
      %540 = vmatpush1.bf16.msra.mxu0 0
      %541 = vmatprep.subr.bf16.mxu0 0
      %542 = vmatpush1.bf16.msra.mxu0 0
      %543 = vmatprep.subr.bf16.mxu0 0
      %544 = vmatpush1.bf16.msra.mxu0 0
      %545 = vmatprep.subr.bf16.mxu0 0
      %546 = vmatpush1.bf16.msra.mxu0 0
      %547 = vmatprep.subr.bf16.mxu0 0
      %548 = vmatpush1.bf16.msra.mxu0 0
      %549 = vmatprep.subr.bf16.mxu0 0
      %550 = vmatpush1.bf16.msra.mxu0 0
      %551 = vmatprep.mubr.bf16.mxu0 0
      %552 = vmatmul.mubr.bf16.gmra.mrb[0].mxu0 %v514
      %v553 = vpop.f32.mrb[0].mxu0
      %v554 = vadd.f32 0.0, %v553
      %v555 = vpop.f32.mrb[0].mxu0
      %v556 = vpop.f32.mrb[0].mxu0
      %v557 = vpop.f32.mrb[0].mxu0
      %558 = vdwg.mxu0
      %560 = vrot.lane.b32.xlu0 %v334, 8
      %v561 = vpop.permute.xlu0 %560
      %564 = vrot.lane.b32.xlu0 %v444, 16
      %v565 = vpop.permute.xlu0 %564
      %568 = vrot.lane.b32.xlu0 %v554, 24
      %v569 = vpop.permute.xlu0 %568
      %v571 = vsel %vm120, %v223, %v561
      %vm572 = vcmask 130048
      %v573 = vsel %vm572, %v571, %v565
      %vm574 = vcmask 195584
      %v575 = vsel %vm574, %v573, %v569
      %vm576 = vcmask 261120
      %577 = vst.msk [vmem:[%s111] sm:$0xff] %vm576, %v575
      %p578 = scmp.lt.s32.totalorder %s12, 1
      %s579 = scalar_select %p578, %s12, 1
      %s580 = smul.addr %s579, 8
      %s581 = scalar_lea.vmem %s1, %s580
      // Predicated region
      $region25: #{self_attention_module_forward.5} parent=23 // pred_check
        %p582 = pneg %p56
      $region26: #{self_attention_module_forward.5} parent=23 // pred_check_branch
        %584 = sbr.rel (%p582) target = $region28
      $region27: #{self_attention_module_forward.5} parent=23 // pred_region
        _
      $region28: #{self_attention_module_forward.5} parent=23 // pred_fallthru
        _
    $region24: #{self_attention_module_forward.5} parent=5 // pred_fallthru
      _
    %p585 = scmp.le.s32.totalorder 2, %s7
    // Predicated region
    $region29: #{self_attention_module_forward.5} parent=5 // pred_check
      %p586 = pneg %p585
    $region30: #{self_attention_module_forward.5} parent=5 // pred_check_branch
      %588 = sbr.rel (%p586) target = $region32
    $region31: #{self_attention_module_forward.5} parent=5 // pred_region
      %s589 = ssub.s32 %s7, 2
      // Predicated region
      $region33: #{self_attention_module_forward.5} parent=31 // pred_check
        %p590 = pneg %p62
      $region34: #{self_attention_module_forward.5} parent=31 // pred_check_branch
        %592 = sbr.rel (%p590) target = $region36
      $region35: #{self_attention_module_forward.5} parent=31 // pred_region
        %p593 = scmp.lt.s32.totalorder %s13, 1
        %s594 = scalar_select %p593, %s13, 1
        %s595 = smul.addr %s594, 8
        %s596 = scalar_lea.vmem %s1, %s595
      $region36: #{self_attention_module_forward.5} parent=31 // pred_fallthru
        _
    $region32: #{self_attention_module_forward.5} parent=5 // pred_fallthru
      _
  $region6: #{self_attention_module_forward.5} parent=0 // loop_footer
    %s11 = sadd.s32 1, %s7
  $region7: #{self_attention_module_forward.5} parent=0 // loop_footer_branch
    %6 = sbr.rel target = $region3
  $region8: #{self_attention_module_forward.5} parent=0 // loop_exit
    _

// kernel: self_attention_module_forward.7
$region0: #{self_attention_module_forward.7}
  #allocation0 [shape = 'u32[]', space=smem, size = 0x4, offset = 0x4, fixed_abs, tag = 'smem constant byte address 0x4 - core index']
  #allocation1 [shape = 'u32[144,128]{1,0:T(1,128)}', space=vmem, size = 0x12000, scoped, tag = 'internal scratch']
  %s0 = inlined_call_operand.vmem [shape: f32[16,32], index: 0, kind: input, shape index: {}]
  %s1 = inlined_call_operand.vmem [shape: bf16[32,64], index: 1, kind: input, shape index: {}]
  %s2 = inlined_call_operand.vmem [shape: f32[1,64], index: 2, kind: input, shape index: {}]
  %s3 = inlined_call_operand.vmem [shape: bf16[64,32], index: 3, kind: input, shape index: {}]
  %s4 = inlined_call_operand.vmem [shape: f32[1,32], index: 4, kind: input, shape index: {}]
  %s5 = inlined_call_operand.vmem [shape: f32[1,32], index: 5, kind: input, shape index: {}]
  %s6 = inlined_call_operand.vmem [shape: f32[1,32], index: 6, kind: input, shape index: {}]
  %s7 = inlined_call_operand.vmem [shape: f32[16,32], index: 7, kind: output, shape index: {}]
  %s8 = sld [smem:[#allocation0]]
  $region38: #{self_attention_module_forward.7} parent=0
    _
  %s10 = ssub.s32 1, %s8
  %s11 = scalar_select 0, %s10, %s8
  // Predicated region
  $region2: #{self_attention_module_forward.7} parent=0 // pred_check
    _
  $region3: #{self_attention_module_forward.7} parent=0 // pred_check_branch
    %13 = sbr.rel (0) target = $region5
  $region4: #{self_attention_module_forward.7} parent=0 // pred_region
    _
  $region5: #{self_attention_module_forward.7} parent=0 // pred_fallthru
    _
  // Predicated region
  $region6: #{self_attention_module_forward.7} parent=0 // pred_check
    _
  $region7: #{self_attention_module_forward.7} parent=0 // pred_check_branch
    %15 = sbr.rel (0) target = $region9
  $region8: #{self_attention_module_forward.7} parent=0 // pred_region
    _
  $region9: #{self_attention_module_forward.7} parent=0 // pred_fallthru
    _
  // Predicated region
  $region10: #{self_attention_module_forward.7} parent=0 // pred_check
    _
  $region11: #{self_attention_module_forward.7} parent=0 // pred_check_branch
    %17 = sbr.rel (0) target = $region13
  $region12: #{self_attention_module_forward.7} parent=0 // pred_region
    _
  $region13: #{self_attention_module_forward.7} parent=0 // pred_fallthru
    _
  // Predicated region
  $region14: #{self_attention_module_forward.7} parent=0 // pred_check
    _
  $region15: #{self_attention_module_forward.7} parent=0 // pred_check_branch
    %19 = sbr.rel (0) target = $region17
  $region16: #{self_attention_module_forward.7} parent=0 // pred_region
    _
  $region17: #{self_attention_module_forward.7} parent=0 // pred_fallthru
    _
  // Predicated region
  $region18: #{self_attention_module_forward.7} parent=0 // pred_check
    _
  $region19: #{self_attention_module_forward.7} parent=0 // pred_check_branch
    %21 = sbr.rel (0) target = $region21
  $region20: #{self_attention_module_forward.7} parent=0 // pred_region
    _
  $region21: #{self_attention_module_forward.7} parent=0 // pred_fallthru
    _
  // Predicated region
  $region22: #{self_attention_module_forward.7} parent=0 // pred_check
    _
  $region23: #{self_attention_module_forward.7} parent=0 // pred_check_branch
    %23 = sbr.rel (0) target = $region25
  $region24: #{self_attention_module_forward.7} parent=0 // pred_region
    _
  $region25: #{self_attention_module_forward.7} parent=0 // pred_fallthru
    _
  // Predicated region
  $region26: #{self_attention_module_forward.7} parent=0 // pred_check
    _
  $region27: #{self_attention_module_forward.7} parent=0 // pred_check_branch
    %25 = sbr.rel (0) target = $region29
  $region28: #{self_attention_module_forward.7} parent=0 // pred_region
    _
  $region29: #{self_attention_module_forward.7} parent=0 // pred_fallthru
    _
  %v27 = vld [vmem:[%s0] sm:$0xff]
  %v28 = vld [vmem:[%s0 + $0x8] sm:$0xff]
  %v29 = vpack.c.bf16 %v28, %v27
  %v30 = vld [vmem:[%s1] sm:$0xf]
  %v31 = vld [vmem:[%s1 + $0x4] sm:$0xf]
  %v32 = vld [vmem:[%s1 + $0x8] sm:$0xf]
  %v33 = vld [vmem:[%s1 + $0xc] sm:$0xf]
  %v34 = vld [vmem:[%s2] sm:$0x1]
  %v36 = vlaneseq
  %v37 = vshrl.u32 %v36, 7
  %v38 = vsub.s32 0, %v37
  %v39 = vrot.slane %v34, %v38
  %v45 = vunpack.c.l.b16 %v30
  %v46 = vunpack.c.l.b16 %v31
  %v47 = vunpack.c.l.b16 %v32
  %v48 = vunpack.c.l.b16 %v33
  %v49 = vpack.c.b16 %v46, %v45
  %v50 = vpack.c.b16 %v48, %v47
  %vm53 = vcmask 261120
  %v55 = vsel %vm53, %v29, 0
  %57 = vmatprep.subr.bf16.mxu0 0
  %58 = vmatpush1.bf16.msra.mxu0 %v49
  %59 = vmatprep.subr.bf16.mxu0 0
  %60 = vmatpush1.bf16.msra.mxu0 %v50
  %61 = vmatprep.subr.bf16.mxu0 0
  %62 = vmatpush1.bf16.msra.mxu0 0
  %63 = vmatprep.subr.bf16.mxu0 0
  %64 = vmatpush1.bf16.msra.mxu0 0
  %65 = vmatprep.subr.bf16.mxu0 0
  %66 = vmatpush1.bf16.msra.mxu0 0
  %67 = vmatprep.subr.bf16.mxu0 0
  %68 = vmatpush1.bf16.msra.mxu0 0
  %69 = vmatprep.subr.bf16.mxu0 0
  %70 = vmatpush1.bf16.msra.mxu0 0
  %71 = vmatprep.subr.bf16.mxu0 0
  %72 = vmatpush1.bf16.msra.mxu0 0
  %73 = vmatprep.subr.bf16.mxu0 0
  %74 = vmatpush1.bf16.msra.mxu0 0
  %75 = vmatprep.subr.bf16.mxu0 0
  %76 = vmatpush1.bf16.msra.mxu0 0
  %77 = vmatprep.subr.bf16.mxu0 0
  %78 = vmatpush1.bf16.msra.mxu0 0
  %79 = vmatprep.subr.bf16.mxu0 0
  %80 = vmatpush1.bf16.msra.mxu0 0
  %81 = vmatprep.subr.bf16.mxu0 0
  %82 = vmatpush1.bf16.msra.mxu0 0
  %83 = vmatprep.subr.bf16.mxu0 0
  %84 = vmatpush1.bf16.msra.mxu0 0
  %85 = vmatprep.subr.bf16.mxu0 0
  %86 = vmatpush1.bf16.msra.mxu0 0
  %87 = vmatprep.subr.bf16.mxu0 0
  %88 = vmatpush1.bf16.msra.mxu0 0
  %89 = vmatprep.mubr.bf16.mxu0 0
  %90 = vmatmul.mubr.bf16.gmra.mrb[0].mxu0 %v55
  %v91 = vpop.f32.mrb[0].mxu0
  %v92 = vadd.f32 %v39, %v91
  %v93 = vpop.f32.mrb[0].mxu0
  %v94 = vpop.f32.mrb[0].mxu0
  %v95 = vadd.f32 %v39, %v94
  %v96 = vpop.f32.mrb[0].mxu0
  %97 = vdwg.mxu0
  %v98 = vmax.f32 %v92, 0.0
  %v99 = vmax.f32 %v95, 0.0
  %v100 = vpack.c.bf16 %v99, %v98
  %v101 = vld [vmem:[%s3] sm:$0xf]
  %v102 = vld [vmem:[%s3 + $0x4] sm:$0xf]
  %v103 = vld [vmem:[%s3 + $0x8] sm:$0xf]
  %v104 = vld [vmem:[%s3 + $0xc] sm:$0xf]
  %v105 = vld [vmem:[%s3 + $0x10] sm:$0xf]
  %v106 = vld [vmem:[%s3 + $0x14] sm:$0xf]
  %v107 = vld [vmem:[%s3 + $0x18] sm:$0xf]
  %v108 = vld [vmem:[%s3 + $0x1c] sm:$0xf]
  %v109 = vld [vmem:[%s4] sm:$0x1]
  %v111 = vlaneseq
  %v112 = vshrl.u32 %v111, 7
  %v113 = vsub.s32 0, %v112
  %v114 = vrot.slane %v109, %v113
  %v124 = vunpack.c.l.b16 %v101
  %v125 = vunpack.c.l.b16 %v102
  %v126 = vunpack.c.l.b16 %v103
  %v127 = vunpack.c.l.b16 %v104
  %v128 = vunpack.c.l.b16 %v105
  %v129 = vunpack.c.l.b16 %v106
  %v130 = vunpack.c.l.b16 %v107
  %v131 = vunpack.c.l.b16 %v108
  %v132 = vpack.c.b16 %v125, %v124
  %v133 = vpack.c.b16 %v127, %v126
  %v134 = vpack.c.b16 %v129, %v128
  %v135 = vpack.c.b16 %v131, %v130
  %vm140 = vcmask 523264
  %v142 = vsel %vm140, %v100, 0
  %144 = vmatprep.subr.bf16.mxu0 0
  %145 = vmatpush1.bf16.msra.mxu0 %v132
  %146 = vmatprep.subr.bf16.mxu0 0
  %147 = vmatpush1.bf16.msra.mxu0 %v133
  %148 = vmatprep.subr.bf16.mxu0 0
  %149 = vmatpush1.bf16.msra.mxu0 %v134
  %150 = vmatprep.subr.bf16.mxu0 0
  %151 = vmatpush1.bf16.msra.mxu0 %v135
  %152 = vmatprep.subr.bf16.mxu0 0
  %153 = vmatpush1.bf16.msra.mxu0 0
  %154 = vmatprep.subr.bf16.mxu0 0
  %155 = vmatpush1.bf16.msra.mxu0 0
  %156 = vmatprep.subr.bf16.mxu0 0
  %157 = vmatpush1.bf16.msra.mxu0 0
  %158 = vmatprep.subr.bf16.mxu0 0
  %159 = vmatpush1.bf16.msra.mxu0 0
  %160 = vmatprep.subr.bf16.mxu0 0
  %161 = vmatpush1.bf16.msra.mxu0 0
  %162 = vmatprep.subr.bf16.mxu0 0
  %163 = vmatpush1.bf16.msra.mxu0 0
  %164 = vmatprep.subr.bf16.mxu0 0
  %165 = vmatpush1.bf16.msra.mxu0 0
  %166 = vmatprep.subr.bf16.mxu0 0
  %167 = vmatpush1.bf16.msra.mxu0 0
  %168 = vmatprep.subr.bf16.mxu0 0
  %169 = vmatpush1.bf16.msra.mxu0 0
  %170 = vmatprep.subr.bf16.mxu0 0
  %171 = vmatpush1.bf16.msra.mxu0 0
  %172 = vmatprep.subr.bf16.mxu0 0
  %173 = vmatpush1.bf16.msra.mxu0 0
  %174 = vmatprep.subr.bf16.mxu0 0
  %175 = vmatpush1.bf16.msra.mxu0 0
  %176 = vmatprep.mubr.bf16.mxu0 0
  %177 = vmatmul.mubr.bf16.gmra.mrb[0].mxu0 %v142
  %v178 = vpop.f32.mrb[0].mxu0
  %v179 = vadd.f32 %v114, %v178
  %v180 = vpop.f32.mrb[0].mxu0
  %v181 = vpop.f32.mrb[0].mxu0
  %v182 = vadd.f32 %v114, %v181
  %v183 = vpop.f32.mrb[0].mxu0
  %184 = vdwg.mxu0
  %v185 = vadd.f32 %v27, %v179
  %v186 = vadd.f32 %v28, %v182
  %v187 = vsel %vm53, %v185, 0.0
  %188 = vadd.xlane.f32.xlu0 %v187
  %v189 = vpop.xlane.xlu0 %188
  %v190 = vsel %vm53, %v186, 0.0
  %191 = vadd.xlane.f32.xlu0 %v190
  %v192 = vpop.xlane.xlu0 %191
  %v193 = vrcp.pop 32.0
  %v194 = vmul.f32 %v189, %v193
  %v195 = vmul.f32 %v192, %v193
  %v196 = vsub.f32 %v185, %v194
  %v197 = vsub.f32 %v186, %v195
  %v198 = vmul.f32 %v196, %v196
  %v199 = vmul.f32 %v197, %v197
  %v200 = vsel %vm53, %v198, 0.0
  %201 = vadd.xlane.f32.xlu0 %v200
  %v202 = vpop.xlane.xlu0 %201
  %v203 = vsel %vm53, %v199, 0.0
  %204 = vadd.xlane.f32.xlu0 %v203
  %v205 = vpop.xlane.xlu0 %204
  %v206 = vmul.f32 %v202, %v193
  %v207 = vmul.f32 %v205, %v193
  %v208 = vadd.f32 %v206, 1e-05
  %v209 = vadd.f32 %v207, 1e-05
  %v210 = vrsqrt.pop %v208
  %v211 = vrsqrt.pop %v209
  %v212 = vmul.f32 %v196, %v210
  %v213 = vmul.f32 %v197, %v211
  %v214 = vld [vmem:[%s5] sm:$0x1]
  %v216 = vlaneseq
  %v217 = vshrl.u32 %v216, 7
  %v218 = vsub.s32 0, %v217
  %v219 = vrot.slane %v214, %v218
  %v221 = vmul.f32 %v212, %v219
  %v222 = vmul.f32 %v213, %v219
  %v223 = vld [vmem:[%s6] sm:$0x1]
  %v225 = vlaneseq
  %v226 = vshrl.u32 %v225, 7
  %v227 = vsub.s32 0, %v226
  %v228 = vrot.slane %v223, %v227
  %v230 = vadd.f32 %v221, %v228
  %v231 = vadd.f32 %v222, %v228
  %232 = vst.msk [vmem:[%s7] sm:$0xff] %vm53, %v230
  %233 = vst.msk [vmem:[%s7 + $0x8] sm:$0xff] %vm53, %v231
  // Predicated region
  $region30: #{self_attention_module_forward.7} parent=0 // pred_check
    _
  $region31: #{self_attention_module_forward.7} parent=0 // pred_check_branch
    %235 = sbr.rel (0) target = $region33
  $region32: #{self_attention_module_forward.7} parent=0 // pred_region
    _
  $region33: #{self_attention_module_forward.7} parent=0 // pred_fallthru
    _
  // Predicated region
  $region34: #{self_attention_module_forward.7} parent=0 // pred_check
    _
  $region35: #{self_attention_module_forward.7} parent=0 // pred_check_branch
    %237 = sbr.rel (0) target = $region37
  $region36: #{self_attention_module_forward.7} parent=0 // pred_region
    _
  $region37: #{self_attention_module_forward.7} parent=0 // pred_fallthru
    _

</llo_original>
